<compile_context>
chip_gen: v7x
topology: tpu7x:2x2x1
jax: 0.10.0
libtpu: 0.0.40
codegen_flags: <defaults>
</compile_context>

<pallas_src>
import functools

import jax
import jax.numpy as jnp
from jax.experimental import pallas as pl
from jax.experimental.pallas import tpu as pltpu


def _round_up(x, m):
    return (x + m - 1) // m * m


def _conv_bn_relu_kernel(x_ref, w_ref, b_ref, o_ref, *, K, Wp, L_out):
    # x_ref: (Cin_p, L_in)       bf16 padded, flattened activations (lane axis = flat spatial)
    # w_ref: (K*K, Cout, Cin_p)  bf16 per-tap weights, BN scale already folded in
    # b_ref: (Cout, 1)           f32 folded BN bias (lane-broadcast)
    # o_ref: (Cout, L_out)       f32 lane-dense output slab
    x = x_ref[...]                                   # single VMEM load; taps are value slices
    cout = w_ref.shape[1]
    acc = jnp.zeros((cout, L_out), jnp.float32)
    for t in range(K * K):                           # unrolled: K*K static tap offsets
        kh, kw = divmod(t, K)
        off = kh * Wp + kw                           # flat-shift of tap (kh, kw)
        xt = x[:, off:off + L_out]                   # (Cin_p, L_out) static lane-offset slice
        acc = acc + jnp.dot(w_ref[t], xt, preferred_element_type=jnp.float32)
    o_ref[...] = jnp.maximum(acc + b_ref[...], 0.0).astype(o_ref.dtype)


def conv_bn_relu(x_nchw, weight_oihw, gamma, beta, running_mean, running_var,
                 *, padding=1, eps=1e-5):
    """Fused Conv2d(bias=False, stride=1, dilation=1) + BatchNorm2d(eval) + ReLU.

    x_nchw:      (N, Cin, H, W)      float32
    weight_oihw: (Cout, Cin, K, K)   float32  (PyTorch conv weight layout)
    returns:     (N, Cout, Ho, Wo)   float32
    """
    N, Cin, H, W = x_nchw.shape
    Cout, _, K, K2 = weight_oihw.shape
    assert K == K2, "square kernels only"

    Hp, Wp = H + 2 * padding, W + 2 * padding
    Ho, Wo = Hp - K + 1, Wp - K + 1                  # stride=1, dilation=1 output size
    S = Hp * Wp                                      # flat padded spatial size per image

    Cin_p = _round_up(Cin, 8)                        # sublane-dense contraction operand
    L_out = _round_up(N * S, 128)                    # lane-dense output slab
    max_off = (K - 1) * Wp + (K - 1)
    L_in = _round_up(L_out + max_off, 128)           # room for the largest tap shift

    # ---- glue (plain JAX): halo pad + flatten; NO K*K im2col inflation in HBM ----
    x_pad = jnp.pad(x_nchw, ((0, 0), (0, 0), (padding, padding), (padding, padding)))
    x_flat = jnp.transpose(x_pad, (1, 0, 2, 3)).reshape(Cin, N * S)      # (Cin, N*Hp*Wp)
    x_packed = jnp.pad(x_flat, ((0, Cin_p - Cin), (0, L_in - N * S)))
    x_packed = x_packed.astype(jnp.bfloat16)                             # bf16 MXU operand

    # Fold eval-mode BN scale into the conv weights; only the bias reaches the kernel.
    inv_std = gamma / jnp.sqrt(running_var + eps)
    w_scaled = weight_oihw * inv_std[:, None, None, None]                # (Cout, Cin, K, K)
    w_taps = jnp.transpose(w_scaled, (2, 3, 0, 1)).reshape(K * K, Cout, Cin)
    w_taps = jnp.pad(w_taps, ((0, 0), (0, 0), (0, Cin_p - Cin))).astype(jnp.bfloat16)
    bias = (beta - running_mean * inv_std).reshape(Cout, 1).astype(jnp.float32)

    kernel = functools.partial(_conv_bn_relu_kernel, K=K, Wp=Wp, L_out=L_out)

    cost = pl.CostEstimate(
        flops=2 * Cout * Cin_p * K * K * L_out,
        transcendentals=0,
        bytes_accessed=2 * (x_packed.size + w_taps.size) + 4 * (bias.size + Cout * L_out),
    )

    y = pl.pallas_call(
        kernel,
        out_shape=jax.ShapeDtypeStruct((Cout, L_out), jnp.float32),
        grid_spec=pltpu.PrefetchScalarGridSpec(
            num_scalar_prefetch=0,
            grid=(1,),                               # single step: everything fits VMEM here
            in_specs=[
                pl.BlockSpec((Cin_p, L_in), lambda i: (0, 0)),
                pl.BlockSpec((K * K, Cout, Cin_p), lambda i: (0, 0, 0)),
                pl.BlockSpec((Cout, 1), lambda i: (0, 0)),
            ],
            out_specs=pl.BlockSpec((Cout, L_out), lambda i: (0, 0)),
        ),
        compiler_params=pltpu.CompilerParams(dimension_semantics=("arbitrary",)),
        cost_estimate=cost,
    )(x_packed, w_taps, bias)

    # Valid-position extraction: padded-grid flat layout -> NCHW (small XLA slice/transpose).
    y = y[:, :N * S].reshape(Cout, N, Hp, Wp)[:, :, :Ho, :Wo]            # (Cout, N, Ho, Wo)
    return jnp.transpose(y, (1, 0, 2, 3))                                # (N, Cout, Ho, Wo)


if __name__ == "__main__":
    # ConvBNReLU(c_in=4, c_out=8, kernel_size=3, stride=1, padding=1, dilation=1)
    N, Cin, H, W = 2, 4, 16, 16
    Cout, K = 8, 3

    key = jax.random.PRNGKey(0)
    kx, kw, kg, kb, km, kv = jax.random.split(key, 6)

    x = jax.random.normal(kx, (N, Cin, H, W), dtype=jnp.float32)
    weight = jax.random.normal(kw, (Cout, Cin, K, K), dtype=jnp.float32) * 0.1
    gamma = 1.0 + 0.1 * jax.random.normal(kg, (Cout,), dtype=jnp.float32)
    beta = 0.1 * jax.random.normal(kb, (Cout,), dtype=jnp.float32)
    running_mean = 0.1 * jax.random.normal(km, (Cout,), dtype=jnp.float32)
    running_var = jnp.abs(1.0 + 0.1 * jax.random.normal(kv, (Cout,), dtype=jnp.float32))

    fused = jax.jit(functools.partial(conv_bn_relu, padding=1, eps=1e-5))
    out = fused(x, weight, gamma, beta, running_mean, running_var)
    out = jax.block_until_ready(out)

    # Reference in plain JAX (f32 conv + eval-mode BN + ReLU).
    ref = jax.lax.conv_general_dilated(
        x, weight, window_strides=(1, 1), padding=((1, 1), (1, 1)),
        dimension_numbers=("NCHW", "OIHW", "NCHW"))
    scale_ref = gamma / jnp.sqrt(running_var + 1e-5)
    shift_ref = beta - running_mean * scale_ref
    ref = jnp.maximum(ref * scale_ref[None, :, None, None] + shift_ref[None, :, None, None], 0.0)

    assert out.shape == (N, Cout, H, W)
    # bf16 MXU operands with f32 accumulation -> loosened tolerance vs f32 reference.
    assert jnp.allclose(out, ref, rtol=5e-2, atol=5e-2), "mismatch vs reference"

    print("KERNEL_OK")
</pallas_src>

<mosaic_0001>
module attributes {stable_mosaic.version = 11 : i64} {
  func.func @_conv_bn_relu_kernel(%arg0: i32, %arg1: memref<8x896xbf16, #tpu.memory_space<vmem>>, %arg2: memref<9x8x8xbf16, #tpu.memory_space<vmem>>, %arg3: memref<8x1xf32, #tpu.memory_space<vmem>>, %arg4: memref<8x768xf32, #tpu.memory_space<vmem>>) attributes {dimension_semantics = [#tpu.dimension_semantics<arbitrary>], iteration_bounds = array<i64: 1>, scalar_prefetch = 0 : i64, scratch_operands = 0 : i64, tpu.core_type = #tpu.core_type<tc>, window_params = [{pipeline_mode = #tpu.pipeline_mode<synchronous>, transform_indices = @transform_0, window_bounds = array<i64: 8, 896>}, {pipeline_mode = #tpu.pipeline_mode<synchronous>, transform_indices = @transform_1, window_bounds = array<i64: 9, 8, 8>}, {pipeline_mode = #tpu.pipeline_mode<synchronous>, transform_indices = @transform_2, window_bounds = array<i64: 8, 1>}, {pipeline_mode = #tpu.pipeline_mode<synchronous>, transform_indices = @transform_3, window_bounds = array<i64: 8, 768>}]} {
    %c0 = arith.constant 0 : index
    %c0_0 = arith.constant 0 : index
    %0 = vector.load %arg1[%c0, %c0_0] : memref<8x896xbf16, #tpu.memory_space<vmem>>, vector<8x896xbf16>
    %cst = arith.constant 0.000000e+00 : f32
    %1 = vector.broadcast %cst : f32 to vector<8x768xf32>
    %2 = vector.extract_strided_slice %0 {offsets = [0, 0], sizes = [8, 768], strides = [1, 1]} : vector<8x896xbf16> to vector<8x768xbf16>
    %c0_1 = arith.constant 0 : index
    %c0_2 = arith.constant 0 : index
    %c0_3 = arith.constant 0 : index
    %3 = vector.load %arg2[%c0_1, %c0_2, %c0_3] : memref<9x8x8xbf16, #tpu.memory_space<vmem>>, vector<1x8x8xbf16>
    %4 = vector.shape_cast %3 : vector<1x8x8xbf16> to vector<8x8xbf16>
    %cst_4 = arith.constant dense<0.000000e+00> : vector<8x768xf32>
    %5 = tpu.matmul %4, %2, %cst_4 {dimension_numbers = #tpu.dot_dimension_numbers<[1], [0], [0], [1], [0, 0, 1, 1], [], []>} : vector<8x8xbf16>, vector<8x768xbf16>, vector<8x768xf32> -> vector<8x768xf32>
    %6 = arith.addf %1, %5 : vector<8x768xf32>
    %7 = vector.extract_strided_slice %0 {offsets = [0, 1], sizes = [8, 768], strides = [1, 1]} : vector<8x896xbf16> to vector<8x768xbf16>
    %c1 = arith.constant 1 : index
    %c0_5 = arith.constant 0 : index
    %c0_6 = arith.constant 0 : index
    %8 = vector.load %arg2[%c1, %c0_5, %c0_6] : memref<9x8x8xbf16, #tpu.memory_space<vmem>>, vector<1x8x8xbf16>
    %9 = vector.shape_cast %8 : vector<1x8x8xbf16> to vector<8x8xbf16>
    %cst_7 = arith.constant dense<0.000000e+00> : vector<8x768xf32>
    %10 = tpu.matmul %9, %7, %cst_7 {dimension_numbers = #tpu.dot_dimension_numbers<[1], [0], [0], [1], [0, 0, 1, 1], [], []>} : vector<8x8xbf16>, vector<8x768xbf16>, vector<8x768xf32> -> vector<8x768xf32>
    %11 = arith.addf %6, %10 : vector<8x768xf32>
    %12 = vector.extract_strided_slice %0 {offsets = [0, 2], sizes = [8, 768], strides = [1, 1]} : vector<8x896xbf16> to vector<8x768xbf16>
    %c2 = arith.constant 2 : index
    %c0_8 = arith.constant 0 : index
    %c0_9 = arith.constant 0 : index
    %13 = vector.load %arg2[%c2, %c0_8, %c0_9] : memref<9x8x8xbf16, #tpu.memory_space<vmem>>, vector<1x8x8xbf16>
    %14 = vector.shape_cast %13 : vector<1x8x8xbf16> to vector<8x8xbf16>
    %cst_10 = arith.constant dense<0.000000e+00> : vector<8x768xf32>
    %15 = tpu.matmul %14, %12, %cst_10 {dimension_numbers = #tpu.dot_dimension_numbers<[1], [0], [0], [1], [0, 0, 1, 1], [], []>} : vector<8x8xbf16>, vector<8x768xbf16>, vector<8x768xf32> -> vector<8x768xf32>
    %16 = arith.addf %11, %15 : vector<8x768xf32>
    %17 = vector.extract_strided_slice %0 {offsets = [0, 18], sizes = [8, 768], strides = [1, 1]} : vector<8x896xbf16> to vector<8x768xbf16>
    %c3 = arith.constant 3 : index
    %c0_11 = arith.constant 0 : index
    %c0_12 = arith.constant 0 : index
    %18 = vector.load %arg2[%c3, %c0_11, %c0_12] : memref<9x8x8xbf16, #tpu.memory_space<vmem>>, vector<1x8x8xbf16>
    %19 = vector.shape_cast %18 : vector<1x8x8xbf16> to vector<8x8xbf16>
    %cst_13 = arith.constant dense<0.000000e+00> : vector<8x768xf32>
    %20 = tpu.matmul %19, %17, %cst_13 {dimension_numbers = #tpu.dot_dimension_numbers<[1], [0], [0], [1], [0, 0, 1, 1], [], []>} : vector<8x8xbf16>, vector<8x768xbf16>, vector<8x768xf32> -> vector<8x768xf32>
    %21 = arith.addf %16, %20 : vector<8x768xf32>
    %22 = vector.extract_strided_slice %0 {offsets = [0, 19], sizes = [8, 768], strides = [1, 1]} : vector<8x896xbf16> to vector<8x768xbf16>
    %c4 = arith.constant 4 : index
    %c0_14 = arith.constant 0 : index
    %c0_15 = arith.constant 0 : index
    %23 = vector.load %arg2[%c4, %c0_14, %c0_15] : memref<9x8x8xbf16, #tpu.memory_space<vmem>>, vector<1x8x8xbf16>
    %24 = vector.shape_cast %23 : vector<1x8x8xbf16> to vector<8x8xbf16>
    %cst_16 = arith.constant dense<0.000000e+00> : vector<8x768xf32>
    %25 = tpu.matmul %24, %22, %cst_16 {dimension_numbers = #tpu.dot_dimension_numbers<[1], [0], [0], [1], [0, 0, 1, 1], [], []>} : vector<8x8xbf16>, vector<8x768xbf16>, vector<8x768xf32> -> vector<8x768xf32>
    %26 = arith.addf %21, %25 : vector<8x768xf32>
    %27 = vector.extract_strided_slice %0 {offsets = [0, 20], sizes = [8, 768], strides = [1, 1]} : vector<8x896xbf16> to vector<8x768xbf16>
    %c5 = arith.constant 5 : index
    %c0_17 = arith.constant 0 : index
    %c0_18 = arith.constant 0 : index
    %28 = vector.load %arg2[%c5, %c0_17, %c0_18] : memref<9x8x8xbf16, #tpu.memory_space<vmem>>, vector<1x8x8xbf16>
    %29 = vector.shape_cast %28 : vector<1x8x8xbf16> to vector<8x8xbf16>
    %cst_19 = arith.constant dense<0.000000e+00> : vector<8x768xf32>
    %30 = tpu.matmul %29, %27, %cst_19 {dimension_numbers = #tpu.dot_dimension_numbers<[1], [0], [0], [1], [0, 0, 1, 1], [], []>} : vector<8x8xbf16>, vector<8x768xbf16>, vector<8x768xf32> -> vector<8x768xf32>
    %31 = arith.addf %26, %30 : vector<8x768xf32>
    %32 = vector.extract_strided_slice %0 {offsets = [0, 36], sizes = [8, 768], strides = [1, 1]} : vector<8x896xbf16> to vector<8x768xbf16>
    %c6 = arith.constant 6 : index
    %c0_20 = arith.constant 0 : index
    %c0_21 = arith.constant 0 : index
    %33 = vector.load %arg2[%c6, %c0_20, %c0_21] : memref<9x8x8xbf16, #tpu.memory_space<vmem>>, vector<1x8x8xbf16>
    %34 = vector.shape_cast %33 : vector<1x8x8xbf16> to vector<8x8xbf16>
    %cst_22 = arith.constant dense<0.000000e+00> : vector<8x768xf32>
    %35 = tpu.matmul %34, %32, %cst_22 {dimension_numbers = #tpu.dot_dimension_numbers<[1], [0], [0], [1], [0, 0, 1, 1], [], []>} : vector<8x8xbf16>, vector<8x768xbf16>, vector<8x768xf32> -> vector<8x768xf32>
    %36 = arith.addf %31, %35 : vector<8x768xf32>
    %37 = vector.extract_strided_slice %0 {offsets = [0, 37], sizes = [8, 768], strides = [1, 1]} : vector<8x896xbf16> to vector<8x768xbf16>
    %c7 = arith.constant 7 : index
    %c0_23 = arith.constant 0 : index
    %c0_24 = arith.constant 0 : index
    %38 = vector.load %arg2[%c7, %c0_23, %c0_24] : memref<9x8x8xbf16, #tpu.memory_space<vmem>>, vector<1x8x8xbf16>
    %39 = vector.shape_cast %38 : vector<1x8x8xbf16> to vector<8x8xbf16>
    %cst_25 = arith.constant dense<0.000000e+00> : vector<8x768xf32>
    %40 = tpu.matmul %39, %37, %cst_25 {dimension_numbers = #tpu.dot_dimension_numbers<[1], [0], [0], [1], [0, 0, 1, 1], [], []>} : vector<8x8xbf16>, vector<8x768xbf16>, vector<8x768xf32> -> vector<8x768xf32>
    %41 = arith.addf %36, %40 : vector<8x768xf32>
    %42 = vector.extract_strided_slice %0 {offsets = [0, 38], sizes = [8, 768], strides = [1, 1]} : vector<8x896xbf16> to vector<8x768xbf16>
    %c8 = arith.constant 8 : index
    %c0_26 = arith.constant 0 : index
    %c0_27 = arith.constant 0 : index
    %43 = vector.load %arg2[%c8, %c0_26, %c0_27] : memref<9x8x8xbf16, #tpu.memory_space<vmem>>, vector<1x8x8xbf16>
    %44 = vector.shape_cast %43 : vector<1x8x8xbf16> to vector<8x8xbf16>
    %cst_28 = arith.constant dense<0.000000e+00> : vector<8x768xf32>
    %45 = tpu.matmul %44, %42, %cst_28 {dimension_numbers = #tpu.dot_dimension_numbers<[1], [0], [0], [1], [0, 0, 1, 1], [], []>} : vector<8x8xbf16>, vector<8x768xbf16>, vector<8x768xf32> -> vector<8x768xf32>
    %46 = arith.addf %41, %45 : vector<8x768xf32>
    %c0_29 = arith.constant 0 : index
    %c0_30 = arith.constant 0 : index
    %47 = vector.load %arg3[%c0_29, %c0_30] : memref<8x1xf32, #tpu.memory_space<vmem>>, vector<8x1xf32>
    %48 = vector.broadcast %47 : vector<8x1xf32> to vector<8x768xf32>
    %49 = arith.addf %46, %48 : vector<8x768xf32>
    %cst_31 = arith.constant 0.000000e+00 : f32
    %50 = vector.broadcast %cst_31 : f32 to vector<8x768xf32>
    %51 = arith.maximumf %49, %50 : vector<8x768xf32>
    %c0_32 = arith.constant 0 : index
    %c0_33 = arith.constant 0 : index
    %52 = vector.load %arg4[%c0_32, %c0_33] : memref<8x768xf32, #tpu.memory_space<vmem>>, vector<8x768xf32>
    tpu.vector_store %arg4[%c0_32, %c0_33], %51 {strides = array<i32>} : memref<8x768xf32, #tpu.memory_space<vmem>>, vector<8x768xf32>,
    return
  }
  func.func @transform_0(%arg0: i32) -> (i32, i32) {
    %c0_i32 = arith.constant 0 : i32
    %c0_i32_0 = arith.constant 0 : i32
    %c0_i32_1 = arith.constant 0 : i32
    return %c0_i32, %c0_i32_0 : i32, i32
  }
  func.func @transform_1(%arg0: i32) -> (i32, i32, i32) {
    %c0_i32 = arith.constant 0 : i32
    %c0_i32_0 = arith.constant 0 : i32
    %c0_i32_1 = arith.constant 0 : i32
    %c0_i32_2 = arith.constant 0 : i32
    return %c0_i32, %c0_i32_0, %c0_i32_1 : i32, i32, i32
  }
  func.func @transform_2(%arg0: i32) -> (i32, i32) {
    %c0_i32 = arith.constant 0 : i32
    %c0_i32_0 = arith.constant 0 : i32
    %c0_i32_1 = arith.constant 0 : i32
    return %c0_i32, %c0_i32_0 : i32, i32
  }
  func.func @transform_3(%arg0: i32) -> (i32, i32) {
    %c0_i32 = arith.constant 0 : i32
    %c0_i32_0 = arith.constant 0 : i32
    %c0_i32_1 = arith.constant 0 : i32
    return %c0_i32, %c0_i32_0 : i32, i32
  }
}

</mosaic_0001>

<llo_original>
// kernel: conv_bn_relu.1
$region0: #{conv_bn_relu.1}
  #allocation0 [shape = 'u32[]', space=smem, size = 0x4, offset = 0x4, fixed_abs, tag = 'smem constant byte address 0x4 - core index']
  #allocation1 [shape = 'u32[144,128]{1,0:T(1,128)}', space=vmem, size = 0x12000, scoped, tag = 'internal scratch']
  %s0 = inlined_call_operand.vmem [shape: bf16[8,896], index: 0, kind: input, shape index: {}]
  %s1 = inlined_call_operand.vmem [shape: bf16[9,8,8], index: 1, kind: input, shape index: {}]
  %s2 = inlined_call_operand.vmem [shape: f32[8,1], index: 2, kind: input, shape index: {}]
  %s3 = inlined_call_operand.vmem [shape: f32[8,768], index: 3, kind: output, shape index: {}]
  %s4 = sld [smem:[#allocation0]]
  $region22: #{conv_bn_relu.1} parent=0
    _
  %s6 = ssub.s32 1, %s4
  %s7 = scalar_select 0, %s6, %s4
  // Predicated region
  $region2: #{conv_bn_relu.1} parent=0 // pred_check
    _
  $region3: #{conv_bn_relu.1} parent=0 // pred_check_branch
    %9 = sbr.rel (0) target = $region5
  $region4: #{conv_bn_relu.1} parent=0 // pred_region
    _
  $region5: #{conv_bn_relu.1} parent=0 // pred_fallthru
    _
  // Predicated region
  $region6: #{conv_bn_relu.1} parent=0 // pred_check
    _
  $region7: #{conv_bn_relu.1} parent=0 // pred_check_branch
    %11 = sbr.rel (0) target = $region9
  $region8: #{conv_bn_relu.1} parent=0 // pred_region
    _
  $region9: #{conv_bn_relu.1} parent=0 // pred_fallthru
    _
  // Predicated region
  $region10: #{conv_bn_relu.1} parent=0 // pred_check
    _
  $region11: #{conv_bn_relu.1} parent=0 // pred_check_branch
    %13 = sbr.rel (0) target = $region13
  $region12: #{conv_bn_relu.1} parent=0 // pred_region
    _
  $region13: #{conv_bn_relu.1} parent=0 // pred_fallthru
    _
  %v15 = vld [vmem:[%s0] sm:$0xff]
  %v16 = vld [vmem:[%s0 + $0x8] sm:$0xff]
  %v17 = vld [vmem:[%s0 + $0x10] sm:$0xff]
  %v18 = vld [vmem:[%s0 + $0x18] sm:$0xf]
  %v19 = vld [vmem:[%s1] sm:$0xf]
  %s20 = scalar_lea.vmem %s1, 4
  %v21 = vld [vmem:[%s20] sm:$0xf]
  %v26 = vunpack.c.l.b16 %v15
  %v27 = vunpack.c.h.b16 %v15
  %v28 = vunpack.c.l.b16 %v16
  %v29 = vunpack.c.h.b16 %v16
  %v30 = vunpack.c.l.b16 %v17
  %v31 = vunpack.c.h.b16 %v17
  %v32 = vunpack.c.l.b16 %v18
  %v33 = vpack.c.b16 %v26, %v26
  %v34 = vpack.c.b16 %v27, %v27
  %v35 = vpack.c.b16 %v28, %v28
  %v36 = vpack.c.b16 %v29, %v29
  %v37 = vpack.c.b16 %v30, %v30
  %v38 = vpack.c.b16 %v31, %v31
  %v39 = vpack.c.b16 %v32, %v32
  %40 = vrot.lane.b32.xlu0 %v33, 127
  %v41 = vpop.permute.xlu0 %40
  %42 = vrot.lane.b32.xlu0 %v34, 127
  %v43 = vpop.permute.xlu0 %42
  %44 = vrot.lane.b32.xlu0 %v35, 127
  %v45 = vpop.permute.xlu0 %44
  %46 = vrot.lane.b32.xlu0 %v36, 127
  %v47 = vpop.permute.xlu0 %46
  %48 = vrot.lane.b32.xlu0 %v37, 127
  %v49 = vpop.permute.xlu0 %48
  %50 = vrot.lane.b32.xlu0 %v38, 127
  %v51 = vpop.permute.xlu0 %50
  %52 = vrot.lane.b32.xlu0 %v39, 127
  %v53 = vpop.permute.xlu0 %52
  %vm54 = vcmask 1039360
  %v55 = vsel %vm54, %v41, %v43
  %v56 = vsel %vm54, %v43, %v45
  %v57 = vsel %vm54, %v45, %v47
  %v58 = vsel %vm54, %v47, %v49
  %v59 = vsel %vm54, %v49, %v51
  %v60 = vsel %vm54, %v51, %v53
  %vm61 = vcmask 64512
  %v63 = vsel %vm61, %v21, 0
  %vm65 = vcmask 1043456
  %v67 = vsel %vm65, %v55, 0
  %v70 = vsel %vm65, %v56, 0
  %v73 = vsel %vm65, %v57, 0
  %v76 = vsel %vm65, %v58, 0
  %v79 = vsel %vm65, %v59, 0
  %v82 = vsel %vm65, %v60, 0
  %84 = vmatprep.subr.bf16.mxu0 %v70
  %85 = vmatpush1.bf16.msra.mxu0 %v67
  %86 = vmatprep.subr.bf16.mxu0 0
  %87 = vmatpush1.bf16.msra.mxu0 0
  %88 = vmatprep.subr.bf16.mxu0 0
  %89 = vmatpush1.bf16.msra.mxu0 0
  %90 = vmatprep.subr.bf16.mxu0 0
  %91 = vmatpush1.bf16.msra.mxu0 0
  %92 = vmatprep.subr.bf16.mxu0 0
  %93 = vmatpush1.bf16.msra.mxu0 0
  %94 = vmatprep.subr.bf16.mxu0 0
  %95 = vmatpush1.bf16.msra.mxu0 0
  %96 = vmatprep.subr.bf16.mxu0 0
  %97 = vmatpush1.bf16.msra.mxu0 0
  %98 = vmatprep.subr.bf16.mxu0 0
  %99 = vmatpush1.bf16.msra.mxu0 0
  %100 = vmatprep.subr.bf16.mxu0 0
  %101 = vmatpush1.bf16.msra.mxu0 0
  %102 = vmatprep.subr.bf16.mxu0 0
  %103 = vmatpush1.bf16.msra.mxu0 0
  %104 = vmatprep.subr.bf16.mxu0 0
  %105 = vmatpush1.bf16.msra.mxu0 0
  %106 = vmatprep.subr.bf16.mxu0 0
  %107 = vmatpush1.bf16.msra.mxu0 0
  %108 = vmatprep.subr.bf16.mxu0 0
  %109 = vmatpush1.bf16.msra.mxu0 0
  %110 = vmatprep.subr.bf16.mxu0 0
  %111 = vmatpush1.bf16.msra.mxu0 0
  %112 = vmatprep.subr.bf16.mxu0 0
  %113 = vmatpush1.bf16.msra.mxu0 0
  %114 = vmatprep.subr.bf16.mxu0 0
  %115 = vmatpush1.bf16.msra.mxu0 0
  %116 = vmatprep.mubr.bf16.mxu0 0
  %117 = vmatmul.mubr.bf16.gmra.mrb[0].mxu0 %v63
  %v118 = vpop.f32.mrb[0].mxu0
  %v119 = vadd.f32 0.0, %v118
  %v120 = vpop.f32.mrb[0].mxu0
  %v121 = vadd.f32 0.0, %v120
  %v122 = vpop.f32.mrb[0].mxu0
  %v123 = vpop.f32.mrb[0].mxu0
  %124 = vdwg.mxu0
  %125 = vmatprep.subr.bf16.mxu0 %v76
  %126 = vmatpush1.bf16.msra.mxu0 %v73
  %127 = vmatprep.subr.bf16.mxu0 0
  %128 = vmatpush1.bf16.msra.mxu0 0
  %129 = vmatprep.subr.bf16.mxu0 0
  %130 = vmatpush1.bf16.msra.mxu0 0
  %131 = vmatprep.subr.bf16.mxu0 0
  %132 = vmatpush1.bf16.msra.mxu0 0
  %133 = vmatprep.subr.bf16.mxu0 0
  %134 = vmatpush1.bf16.msra.mxu0 0
  %135 = vmatprep.subr.bf16.mxu0 0
  %136 = vmatpush1.bf16.msra.mxu0 0
  %137 = vmatprep.subr.bf16.mxu0 0
  %138 = vmatpush1.bf16.msra.mxu0 0
  %139 = vmatprep.subr.bf16.mxu0 0
  %140 = vmatpush1.bf16.msra.mxu0 0
  %141 = vmatprep.subr.bf16.mxu0 0
  %142 = vmatpush1.bf16.msra.mxu0 0
  %143 = vmatprep.subr.bf16.mxu0 0
  %144 = vmatpush1.bf16.msra.mxu0 0
  %145 = vmatprep.subr.bf16.mxu0 0
  %146 = vmatpush1.bf16.msra.mxu0 0
  %147 = vmatprep.subr.bf16.mxu0 0
  %148 = vmatpush1.bf16.msra.mxu0 0
  %149 = vmatprep.subr.bf16.mxu0 0
  %150 = vmatpush1.bf16.msra.mxu0 0
  %151 = vmatprep.subr.bf16.mxu0 0
  %152 = vmatpush1.bf16.msra.mxu0 0
  %153 = vmatprep.subr.bf16.mxu0 0
  %154 = vmatpush1.bf16.msra.mxu0 0
  %155 = vmatprep.subr.bf16.mxu0 0
  %156 = vmatpush1.bf16.msra.mxu0 0
  %157 = vmatprep.mubr.bf16.mxu0 0
  %158 = vmatmul.mubr.bf16.gmra.mrb[0].mxu0 %v63
  %v159 = vpop.f32.mrb[0].mxu0
  %v160 = vadd.f32 0.0, %v159
  %v161 = vpop.f32.mrb[0].mxu0
  %v162 = vadd.f32 0.0, %v161
  %v163 = vpop.f32.mrb[0].mxu0
  %v164 = vpop.f32.mrb[0].mxu0
  %165 = vdwg.mxu0
  %166 = vmatprep.subr.bf16.mxu0 %v82
  %167 = vmatpush1.bf16.msra.mxu0 %v79
  %168 = vmatprep.subr.bf16.mxu0 0
  %169 = vmatpush1.bf16.msra.mxu0 0
  %170 = vmatprep.subr.bf16.mxu0 0
  %171 = vmatpush1.bf16.msra.mxu0 0
  %172 = vmatprep.subr.bf16.mxu0 0
  %173 = vmatpush1.bf16.msra.mxu0 0
  %174 = vmatprep.subr.bf16.mxu0 0
  %175 = vmatpush1.bf16.msra.mxu0 0
  %176 = vmatprep.subr.bf16.mxu0 0
  %177 = vmatpush1.bf16.msra.mxu0 0
  %178 = vmatprep.subr.bf16.mxu0 0
  %179 = vmatpush1.bf16.msra.mxu0 0
  %180 = vmatprep.subr.bf16.mxu0 0
  %181 = vmatpush1.bf16.msra.mxu0 0
  %182 = vmatprep.subr.bf16.mxu0 0
  %183 = vmatpush1.bf16.msra.mxu0 0
  %184 = vmatprep.subr.bf16.mxu0 0
  %185 = vmatpush1.bf16.msra.mxu0 0
  %186 = vmatprep.subr.bf16.mxu0 0
  %187 = vmatpush1.bf16.msra.mxu0 0
  %188 = vmatprep.subr.bf16.mxu0 0
  %189 = vmatpush1.bf16.msra.mxu0 0
  %190 = vmatprep.subr.bf16.mxu0 0
  %191 = vmatpush1.bf16.msra.mxu0 0
  %192 = vmatprep.subr.bf16.mxu0 0
  %193 = vmatpush1.bf16.msra.mxu0 0
  %194 = vmatprep.subr.bf16.mxu0 0
  %195 = vmatpush1.bf16.msra.mxu0 0
  %196 = vmatprep.subr.bf16.mxu0 0
  %197 = vmatpush1.bf16.msra.mxu0 0
  %198 = vmatprep.mubr.bf16.mxu0 0
  %199 = vmatmul.mubr.bf16.gmra.mrb[0].mxu0 %v63
  %v200 = vpop.f32.mrb[0].mxu0
  %v201 = vadd.f32 0.0, %v200
  %v202 = vpop.f32.mrb[0].mxu0
  %v203 = vadd.f32 0.0, %v202
  %v204 = vpop.f32.mrb[0].mxu0
  %v205 = vpop.f32.mrb[0].mxu0
  %206 = vdwg.mxu0
  %v208 = vsel %vm61, %v19, 0
  %v211 = vsel %vm65, %v33, 0
  %v214 = vsel %vm65, %v34, 0
  %v217 = vsel %vm65, %v35, 0
  %v220 = vsel %vm65, %v36, 0
  %v223 = vsel %vm65, %v37, 0
  %v226 = vsel %vm65, %v38, 0
  %228 = vmatprep.subr.bf16.mxu0 %v214
  %229 = vmatpush1.bf16.msra.mxu0 %v211
  %230 = vmatprep.subr.bf16.mxu0 0
  %231 = vmatpush1.bf16.msra.mxu0 0
  %232 = vmatprep.subr.bf16.mxu0 0
  %233 = vmatpush1.bf16.msra.mxu0 0
  %234 = vmatprep.subr.bf16.mxu0 0
  %235 = vmatpush1.bf16.msra.mxu0 0
  %236 = vmatprep.subr.bf16.mxu0 0
  %237 = vmatpush1.bf16.msra.mxu0 0
  %238 = vmatprep.subr.bf16.mxu0 0
  %239 = vmatpush1.bf16.msra.mxu0 0
  %240 = vmatprep.subr.bf16.mxu0 0
  %241 = vmatpush1.bf16.msra.mxu0 0
  %242 = vmatprep.subr.bf16.mxu0 0
  %243 = vmatpush1.bf16.msra.mxu0 0
  %244 = vmatprep.subr.bf16.mxu0 0
  %245 = vmatpush1.bf16.msra.mxu0 0
  %246 = vmatprep.subr.bf16.mxu0 0
  %247 = vmatpush1.bf16.msra.mxu0 0
  %248 = vmatprep.subr.bf16.mxu0 0
  %249 = vmatpush1.bf16.msra.mxu0 0
  %250 = vmatprep.subr.bf16.mxu0 0
  %251 = vmatpush1.bf16.msra.mxu0 0
  %252 = vmatprep.subr.bf16.mxu0 0
  %253 = vmatpush1.bf16.msra.mxu0 0
  %254 = vmatprep.subr.bf16.mxu0 0
  %255 = vmatpush1.bf16.msra.mxu0 0
  %256 = vmatprep.subr.bf16.mxu0 0
  %257 = vmatpush1.bf16.msra.mxu0 0
  %258 = vmatprep.subr.bf16.mxu0 0
  %259 = vmatpush1.bf16.msra.mxu0 0
  %260 = vmatprep.mubr.bf16.mxu0 0
  %261 = vmatmul.mubr.bf16.gmra.mrb[0].mxu0 %v208
  %v262 = vpop.f32.mrb[0].mxu0
  %v263 = vadd.f32 %v119, %v262
  %v264 = vpop.f32.mrb[0].mxu0
  %v265 = vadd.f32 %v121, %v264
  %v266 = vpop.f32.mrb[0].mxu0
  %v267 = vpop.f32.mrb[0].mxu0
  %268 = vdwg.mxu0
  %269 = vmatprep.subr.bf16.mxu0 %v220
  %270 = vmatpush1.bf16.msra.mxu0 %v217
  %271 = vmatprep.subr.bf16.mxu0 0
  %272 = vmatpush1.bf16.msra.mxu0 0
  %273 = vmatprep.subr.bf16.mxu0 0
  %274 = vmatpush1.bf16.msra.mxu0 0
  %275 = vmatprep.subr.bf16.mxu0 0
  %276 = vmatpush1.bf16.msra.mxu0 0
  %277 = vmatprep.subr.bf16.mxu0 0
  %278 = vmatpush1.bf16.msra.mxu0 0
  %279 = vmatprep.subr.bf16.mxu0 0
  %280 = vmatpush1.bf16.msra.mxu0 0
  %281 = vmatprep.subr.bf16.mxu0 0
  %282 = vmatpush1.bf16.msra.mxu0 0
  %283 = vmatprep.subr.bf16.mxu0 0
  %284 = vmatpush1.bf16.msra.mxu0 0
  %285 = vmatprep.subr.bf16.mxu0 0
  %286 = vmatpush1.bf16.msra.mxu0 0
  %287 = vmatprep.subr.bf16.mxu0 0
  %288 = vmatpush1.bf16.msra.mxu0 0
  %289 = vmatprep.subr.bf16.mxu0 0
  %290 = vmatpush1.bf16.msra.mxu0 0
  %291 = vmatprep.subr.bf16.mxu0 0
  %292 = vmatpush1.bf16.msra.mxu0 0
  %293 = vmatprep.subr.bf16.mxu0 0
  %294 = vmatpush1.bf16.msra.mxu0 0
  %295 = vmatprep.subr.bf16.mxu0 0
  %296 = vmatpush1.bf16.msra.mxu0 0
  %297 = vmatprep.subr.bf16.mxu0 0
  %298 = vmatpush1.bf16.msra.mxu0 0
  %299 = vmatprep.subr.bf16.mxu0 0
  %300 = vmatpush1.bf16.msra.mxu0 0
  %301 = vmatprep.mubr.bf16.mxu0 0
  %302 = vmatmul.mubr.bf16.gmra.mrb[0].mxu0 %v208
  %v303 = vpop.f32.mrb[0].mxu0
  %v304 = vadd.f32 %v160, %v303
  %v305 = vpop.f32.mrb[0].mxu0
  %v306 = vadd.f32 %v162, %v305
  %v307 = vpop.f32.mrb[0].mxu0
  %v308 = vpop.f32.mrb[0].mxu0
  %309 = vdwg.mxu0
  %310 = vmatprep.subr.bf16.mxu0 %v226
  %311 = vmatpush1.bf16.msra.mxu0 %v223
  %312 = vmatprep.subr.bf16.mxu0 0
  %313 = vmatpush1.bf16.msra.mxu0 0
  %314 = vmatprep.subr.bf16.mxu0 0
  %315 = vmatpush1.bf16.msra.mxu0 0
  %316 = vmatprep.subr.bf16.mxu0 0
  %317 = vmatpush1.bf16.msra.mxu0 0
  %318 = vmatprep.subr.bf16.mxu0 0
  %319 = vmatpush1.bf16.msra.mxu0 0
  %320 = vmatprep.subr.bf16.mxu0 0
  %321 = vmatpush1.bf16.msra.mxu0 0
  %322 = vmatprep.subr.bf16.mxu0 0
  %323 = vmatpush1.bf16.msra.mxu0 0
  %324 = vmatprep.subr.bf16.mxu0 0
  %325 = vmatpush1.bf16.msra.mxu0 0
  %326 = vmatprep.subr.bf16.mxu0 0
  %327 = vmatpush1.bf16.msra.mxu0 0
  %328 = vmatprep.subr.bf16.mxu0 0
  %329 = vmatpush1.bf16.msra.mxu0 0
  %330 = vmatprep.subr.bf16.mxu0 0
  %331 = vmatpush1.bf16.msra.mxu0 0
  %332 = vmatprep.subr.bf16.mxu0 0
  %333 = vmatpush1.bf16.msra.mxu0 0
  %334 = vmatprep.subr.bf16.mxu0 0
  %335 = vmatpush1.bf16.msra.mxu0 0
  %336 = vmatprep.subr.bf16.mxu0 0
  %337 = vmatpush1.bf16.msra.mxu0 0
  %338 = vmatprep.subr.bf16.mxu0 0
  %339 = vmatpush1.bf16.msra.mxu0 0
  %340 = vmatprep.subr.bf16.mxu0 0
  %341 = vmatpush1.bf16.msra.mxu0 0
  %342 = vmatprep.mubr.bf16.mxu0 0
  %343 = vmatmul.mubr.bf16.gmra.mrb[0].mxu0 %v208
  %v344 = vpop.f32.mrb[0].mxu0
  %v345 = vadd.f32 %v201, %v344
  %v346 = vpop.f32.mrb[0].mxu0
  %v347 = vadd.f32 %v203, %v346
  %v348 = vpop.f32.mrb[0].mxu0
  %v349 = vpop.f32.mrb[0].mxu0
  %350 = vdwg.mxu0
  %s351 = scalar_lea.vmem %s1, 8
  %v352 = vld [vmem:[%s351] sm:$0xf]
  %353 = vrot.lane.b32.xlu0 %v33, 126
  %v354 = vpop.permute.xlu0 %353
  %355 = vrot.lane.b32.xlu0 %v34, 126
  %v356 = vpop.permute.xlu0 %355
  %357 = vrot.lane.b32.xlu0 %v35, 126
  %v358 = vpop.permute.xlu0 %357
  %359 = vrot.lane.b32.xlu0 %v36, 126
  %v360 = vpop.permute.xlu0 %359
  %361 = vrot.lane.b32.xlu0 %v37, 126
  %v362 = vpop.permute.xlu0 %361
  %363 = vrot.lane.b32.xlu0 %v38, 126
  %v364 = vpop.permute.xlu0 %363
  %365 = vrot.lane.b32.xlu0 %v39, 126
  %v366 = vpop.permute.xlu0 %365
  %vm367 = vcmask 1031168
  %v368 = vsel %vm367, %v354, %v356
  %v369 = vsel %vm367, %v356, %v358
  %v370 = vsel %vm367, %v358, %v360
  %v371 = vsel %vm367, %v360, %v362
  %v372 = vsel %vm367, %v362, %v364
  %v373 = vsel %vm367, %v364, %v366
  %v375 = vsel %vm61, %v352, 0
  %v378 = vsel %vm65, %v368, 0
  %v381 = vsel %vm65, %v369, 0
  %v384 = vsel %vm65, %v370, 0
  %v387 = vsel %vm65, %v371, 0
  %v390 = vsel %vm65, %v372, 0
  %v393 = vsel %vm65, %v373, 0
  %395 = vmatprep.subr.bf16.mxu0 %v381
  %396 = vmatpush1.bf16.msra.mxu0 %v378
  %397 = vmatprep.subr.bf16.mxu0 0
  %398 = vmatpush1.bf16.msra.mxu0 0
  %399 = vmatprep.subr.bf16.mxu0 0
  %400 = vmatpush1.bf16.msra.mxu0 0
  %401 = vmatprep.subr.bf16.mxu0 0
  %402 = vmatpush1.bf16.msra.mxu0 0
  %403 = vmatprep.subr.bf16.mxu0 0
  %404 = vmatpush1.bf16.msra.mxu0 0
  %405 = vmatprep.subr.bf16.mxu0 0
  %406 = vmatpush1.bf16.msra.mxu0 0
  %407 = vmatprep.subr.bf16.mxu0 0
  %408 = vmatpush1.bf16.msra.mxu0 0
  %409 = vmatprep.subr.bf16.mxu0 0
  %410 = vmatpush1.bf16.msra.mxu0 0
  %411 = vmatprep.subr.bf16.mxu0 0
  %412 = vmatpush1.bf16.msra.mxu0 0
  %413 = vmatprep.subr.bf16.mxu0 0
  %414 = vmatpush1.bf16.msra.mxu0 0
  %415 = vmatprep.subr.bf16.mxu0 0
  %416 = vmatpush1.bf16.msra.mxu0 0
  %417 = vmatprep.subr.bf16.mxu0 0
  %418 = vmatpush1.bf16.msra.mxu0 0
  %419 = vmatprep.subr.bf16.mxu0 0
  %420 = vmatpush1.bf16.msra.mxu0 0
  %421 = vmatprep.subr.bf16.mxu0 0
  %422 = vmatpush1.bf16.msra.mxu0 0
  %423 = vmatprep.subr.bf16.mxu0 0
  %424 = vmatpush1.bf16.msra.mxu0 0
  %425 = vmatprep.subr.bf16.mxu0 0
  %426 = vmatpush1.bf16.msra.mxu0 0
  %427 = vmatprep.mubr.bf16.mxu0 0
  %428 = vmatmul.mubr.bf16.gmra.mrb[0].mxu0 %v375
  %v429 = vpop.f32.mrb[0].mxu0
  %v430 = vadd.f32 0.0, %v429
  %v431 = vpop.f32.mrb[0].mxu0
  %v432 = vadd.f32 0.0, %v431
  %v433 = vpop.f32.mrb[0].mxu0
  %v434 = vpop.f32.mrb[0].mxu0
  %435 = vdwg.mxu0
  %436 = vmatprep.subr.bf16.mxu0 %v387
  %437 = vmatpush1.bf16.msra.mxu0 %v384
  %438 = vmatprep.subr.bf16.mxu0 0
  %439 = vmatpush1.bf16.msra.mxu0 0
  %440 = vmatprep.subr.bf16.mxu0 0
  %441 = vmatpush1.bf16.msra.mxu0 0
  %442 = vmatprep.subr.bf16.mxu0 0
  %443 = vmatpush1.bf16.msra.mxu0 0
  %444 = vmatprep.subr.bf16.mxu0 0
  %445 = vmatpush1.bf16.msra.mxu0 0
  %446 = vmatprep.subr.bf16.mxu0 0
  %447 = vmatpush1.bf16.msra.mxu0 0
  %448 = vmatprep.subr.bf16.mxu0 0
  %449 = vmatpush1.bf16.msra.mxu0 0
  %450 = vmatprep.subr.bf16.mxu0 0
  %451 = vmatpush1.bf16.msra.mxu0 0
  %452 = vmatprep.subr.bf16.mxu0 0
  %453 = vmatpush1.bf16.msra.mxu0 0
  %454 = vmatprep.subr.bf16.mxu0 0
  %455 = vmatpush1.bf16.msra.mxu0 0
  %456 = vmatprep.subr.bf16.mxu0 0
  %457 = vmatpush1.bf16.msra.mxu0 0
  %458 = vmatprep.subr.bf16.mxu0 0
  %459 = vmatpush1.bf16.msra.mxu0 0
  %460 = vmatprep.subr.bf16.mxu0 0
  %461 = vmatpush1.bf16.msra.mxu0 0
  %462 = vmatprep.subr.bf16.mxu0 0
  %463 = vmatpush1.bf16.msra.mxu0 0
  %464 = vmatprep.subr.bf16.mxu0 0
  %465 = vmatpush1.bf16.msra.mxu0 0
  %466 = vmatprep.subr.bf16.mxu0 0
  %467 = vmatpush1.bf16.msra.mxu0 0
  %468 = vmatprep.mubr.bf16.mxu0 0
  %469 = vmatmul.mubr.bf16.gmra.mrb[0].mxu0 %v375
  %v470 = vpop.f32.mrb[0].mxu0
  %v471 = vadd.f32 0.0, %v470
  %v472 = vpop.f32.mrb[0].mxu0
  %v473 = vadd.f32 0.0, %v472
  %v474 = vpop.f32.mrb[0].mxu0
  %v475 = vpop.f32.mrb[0].mxu0
  %476 = vdwg.mxu0
  %477 = vmatprep.subr.bf16.mxu0 %v393
  %478 = vmatpush1.bf16.msra.mxu0 %v390
  %479 = vmatprep.subr.bf16.mxu0 0
  %480 = vmatpush1.bf16.msra.mxu0 0
  %481 = vmatprep.subr.bf16.mxu0 0
  %482 = vmatpush1.bf16.msra.mxu0 0
  %483 = vmatprep.subr.bf16.mxu0 0
  %484 = vmatpush1.bf16.msra.mxu0 0
  %485 = vmatprep.subr.bf16.mxu0 0
  %486 = vmatpush1.bf16.msra.mxu0 0
  %487 = vmatprep.subr.bf16.mxu0 0
  %488 = vmatpush1.bf16.msra.mxu0 0
  %489 = vmatprep.subr.bf16.mxu0 0
  %490 = vmatpush1.bf16.msra.mxu0 0
  %491 = vmatprep.subr.bf16.mxu0 0
  %492 = vmatpush1.bf16.msra.mxu0 0
  %493 = vmatprep.subr.bf16.mxu0 0
  %494 = vmatpush1.bf16.msra.mxu0 0
  %495 = vmatprep.subr.bf16.mxu0 0
  %496 = vmatpush1.bf16.msra.mxu0 0
  %497 = vmatprep.subr.bf16.mxu0 0
  %498 = vmatpush1.bf16.msra.mxu0 0
  %499 = vmatprep.subr.bf16.mxu0 0
  %500 = vmatpush1.bf16.msra.mxu0 0
  %501 = vmatprep.subr.bf16.mxu0 0
  %502 = vmatpush1.bf16.msra.mxu0 0
  %503 = vmatprep.subr.bf16.mxu0 0
  %504 = vmatpush1.bf16.msra.mxu0 0
  %505 = vmatprep.subr.bf16.mxu0 0
  %506 = vmatpush1.bf16.msra.mxu0 0
  %507 = vmatprep.subr.bf16.mxu0 0
  %508 = vmatpush1.bf16.msra.mxu0 0
  %509 = vmatprep.mubr.bf16.mxu0 0
  %510 = vmatmul.mubr.bf16.gmra.mrb[0].mxu0 %v375
  %v511 = vpop.f32.mrb[0].mxu0
  %v512 = vadd.f32 0.0, %v511
  %v513 = vpop.f32.mrb[0].mxu0
  %v514 = vadd.f32 0.0, %v513
  %v515 = vpop.f32.mrb[0].mxu0
  %v516 = vpop.f32.mrb[0].mxu0
  %517 = vdwg.mxu0
  %v518 = vadd.f32 %v263, %v430
  %v519 = vadd.f32 %v265, %v432
  %v520 = vadd.f32 %v304, %v471
  %v521 = vadd.f32 %v306, %v473
  %v522 = vadd.f32 %v345, %v512
  %v523 = vadd.f32 %v347, %v514
  %s524 = scalar_lea.vmem %s1, 12
  %v525 = vld [vmem:[%s524] sm:$0xf]
  %526 = vrot.lane.b32.xlu0 %v33, 110
  %v527 = vpop.permute.xlu0 %526
  %528 = vrot.lane.b32.xlu0 %v34, 110
  %v529 = vpop.permute.xlu0 %528
  %530 = vrot.lane.b32.xlu0 %v35, 110
  %v531 = vpop.permute.xlu0 %530
  %532 = vrot.lane.b32.xlu0 %v36, 110
  %v533 = vpop.permute.xlu0 %532
  %534 = vrot.lane.b32.xlu0 %v37, 110
  %v535 = vpop.permute.xlu0 %534
  %536 = vrot.lane.b32.xlu0 %v38, 110
  %v537 = vpop.permute.xlu0 %536
  %538 = vrot.lane.b32.xlu0 %v39, 110
  %v539 = vpop.permute.xlu0 %538
  %vm540 = vcmask 900096
  %v541 = vsel %vm540, %v527, %v529
  %v542 = vsel %vm540, %v529, %v531
  %v543 = vsel %vm540, %v531, %v533
  %v544 = vsel %vm540, %v533, %v535
  %v545 = vsel %vm540, %v535, %v537
  %v546 = vsel %vm540, %v537, %v539
  %v548 = vsel %vm61, %v525, 0
  %v551 = vsel %vm65, %v541, 0
  %v554 = vsel %vm65, %v542, 0
  %v557 = vsel %vm65, %v543, 0
  %v560 = vsel %vm65, %v544, 0
  %v563 = vsel %vm65, %v545, 0
  %v566 = vsel %vm65, %v546, 0
  %568 = vmatprep.subr.bf16.mxu0 %v554
  %569 = vmatpush1.bf16.msra.mxu0 %v551
  %570 = vmatprep.subr.bf16.mxu0 0
  %571 = vmatpush1.bf16.msra.mxu0 0
  %572 = vmatprep.subr.bf16.mxu0 0
  %573 = vmatpush1.bf16.msra.mxu0 0
  %574 = vmatprep.subr.bf16.mxu0 0
  %575 = vmatpush1.bf16.msra.mxu0 0
  %576 = vmatprep.subr.bf16.mxu0 0
  %577 = vmatpush1.bf16.msra.mxu0 0
  %578 = vmatprep.subr.bf16.mxu0 0
  %579 = vmatpush1.bf16.msra.mxu0 0
  %580 = vmatprep.subr.bf16.mxu0 0
  %581 = vmatpush1.bf16.msra.mxu0 0
  %582 = vmatprep.subr.bf16.mxu0 0
  %583 = vmatpush1.bf16.msra.mxu0 0
  %584 = vmatprep.subr.bf16.mxu0 0
  %585 = vmatpush1.bf16.msra.mxu0 0
  %586 = vmatprep.subr.bf16.mxu0 0
  %587 = vmatpush1.bf16.msra.mxu0 0
  %588 = vmatprep.subr.bf16.mxu0 0
  %589 = vmatpush1.bf16.msra.mxu0 0
  %590 = vmatprep.subr.bf16.mxu0 0
  %591 = vmatpush1.bf16.msra.mxu0 0
  %592 = vmatprep.subr.bf16.mxu0 0
  %593 = vmatpush1.bf16.msra.mxu0 0
  %594 = vmatprep.subr.bf16.mxu0 0
  %595 = vmatpush1.bf16.msra.mxu0 0
  %596 = vmatprep.subr.bf16.mxu0 0
  %597 = vmatpush1.bf16.msra.mxu0 0
  %598 = vmatprep.subr.bf16.mxu0 0
  %599 = vmatpush1.bf16.msra.mxu0 0
  %600 = vmatprep.mubr.bf16.mxu0 0
  %601 = vmatmul.mubr.bf16.gmra.mrb[0].mxu0 %v548
  %v602 = vpop.f32.mrb[0].mxu0
  %v603 = vadd.f32 0.0, %v602
  %v604 = vpop.f32.mrb[0].mxu0
  %v605 = vadd.f32 0.0, %v604
  %v606 = vpop.f32.mrb[0].mxu0
  %v607 = vpop.f32.mrb[0].mxu0
  %608 = vdwg.mxu0
  %609 = vmatprep.subr.bf16.mxu0 %v560
  %610 = vmatpush1.bf16.msra.mxu0 %v557
  %611 = vmatprep.subr.bf16.mxu0 0
  %612 = vmatpush1.bf16.msra.mxu0 0
  %613 = vmatprep.subr.bf16.mxu0 0
  %614 = vmatpush1.bf16.msra.mxu0 0
  %615 = vmatprep.subr.bf16.mxu0 0
  %616 = vmatpush1.bf16.msra.mxu0 0
  %617 = vmatprep.subr.bf16.mxu0 0
  %618 = vmatpush1.bf16.msra.mxu0 0
  %619 = vmatprep.subr.bf16.mxu0 0
  %620 = vmatpush1.bf16.msra.mxu0 0
  %621 = vmatprep.subr.bf16.mxu0 0
  %622 = vmatpush1.bf16.msra.mxu0 0
  %623 = vmatprep.subr.bf16.mxu0 0
  %624 = vmatpush1.bf16.msra.mxu0 0
  %625 = vmatprep.subr.bf16.mxu0 0
  %626 = vmatpush1.bf16.msra.mxu0 0
  %627 = vmatprep.subr.bf16.mxu0 0
  %628 = vmatpush1.bf16.msra.mxu0 0
  %629 = vmatprep.subr.bf16.mxu0 0
  %630 = vmatpush1.bf16.msra.mxu0 0
  %631 = vmatprep.subr.bf16.mxu0 0
  %632 = vmatpush1.bf16.msra.mxu0 0
  %633 = vmatprep.subr.bf16.mxu0 0
  %634 = vmatpush1.bf16.msra.mxu0 0
  %635 = vmatprep.subr.bf16.mxu0 0
  %636 = vmatpush1.bf16.msra.mxu0 0
  %637 = vmatprep.subr.bf16.mxu0 0
  %638 = vmatpush1.bf16.msra.mxu0 0
  %639 = vmatprep.subr.bf16.mxu0 0
  %640 = vmatpush1.bf16.msra.mxu0 0
  %641 = vmatprep.mubr.bf16.mxu0 0
  %642 = vmatmul.mubr.bf16.gmra.mrb[0].mxu0 %v548
  %v643 = vpop.f32.mrb[0].mxu0
  %v644 = vadd.f32 0.0, %v643
  %v645 = vpop.f32.mrb[0].mxu0
  %v646 = vadd.f32 0.0, %v645
  %v647 = vpop.f32.mrb[0].mxu0
  %v648 = vpop.f32.mrb[0].mxu0
  %649 = vdwg.mxu0
  %650 = vmatprep.subr.bf16.mxu0 %v566
  %651 = vmatpush1.bf16.msra.mxu0 %v563
  %652 = vmatprep.subr.bf16.mxu0 0
  %653 = vmatpush1.bf16.msra.mxu0 0
  %654 = vmatprep.subr.bf16.mxu0 0
  %655 = vmatpush1.bf16.msra.mxu0 0
  %656 = vmatprep.subr.bf16.mxu0 0
  %657 = vmatpush1.bf16.msra.mxu0 0
  %658 = vmatprep.subr.bf16.mxu0 0
  %659 = vmatpush1.bf16.msra.mxu0 0
  %660 = vmatprep.subr.bf16.mxu0 0
  %661 = vmatpush1.bf16.msra.mxu0 0
  %662 = vmatprep.subr.bf16.mxu0 0
  %663 = vmatpush1.bf16.msra.mxu0 0
  %664 = vmatprep.subr.bf16.mxu0 0
  %665 = vmatpush1.bf16.msra.mxu0 0
  %666 = vmatprep.subr.bf16.mxu0 0
  %667 = vmatpush1.bf16.msra.mxu0 0
  %668 = vmatprep.subr.bf16.mxu0 0
  %669 = vmatpush1.bf16.msra.mxu0 0
  %670 = vmatprep.subr.bf16.mxu0 0
  %671 = vmatpush1.bf16.msra.mxu0 0
  %672 = vmatprep.subr.bf16.mxu0 0
  %673 = vmatpush1.bf16.msra.mxu0 0
  %674 = vmatprep.subr.bf16.mxu0 0
  %675 = vmatpush1.bf16.msra.mxu0 0
  %676 = vmatprep.subr.bf16.mxu0 0
  %677 = vmatpush1.bf16.msra.mxu0 0
  %678 = vmatprep.subr.bf16.mxu0 0
  %679 = vmatpush1.bf16.msra.mxu0 0
  %680 = vmatprep.subr.bf16.mxu0 0
  %681 = vmatpush1.bf16.msra.mxu0 0
  %682 = vmatprep.mubr.bf16.mxu0 0
  %683 = vmatmul.mubr.bf16.gmra.mrb[0].mxu0 %v548
  %v684 = vpop.f32.mrb[0].mxu0
  %v685 = vadd.f32 0.0, %v684
  %v686 = vpop.f32.mrb[0].mxu0
  %v687 = vadd.f32 0.0, %v686
  %v688 = vpop.f32.mrb[0].mxu0
  %v689 = vpop.f32.mrb[0].mxu0
  %690 = vdwg.mxu0
  %v691 = vadd.f32 %v518, %v603
  %v692 = vadd.f32 %v519, %v605
  %v693 = vadd.f32 %v520, %v644
  %v694 = vadd.f32 %v521, %v646
  %v695 = vadd.f32 %v522, %v685
  %v696 = vadd.f32 %v523, %v687
  %s697 = scalar_lea.vmem %s1, 16
  %v698 = vld [vmem:[%s697] sm:$0xf]
  %699 = vrot.lane.b32.xlu0 %v33, 109
  %v700 = vpop.permute.xlu0 %699
  %701 = vrot.lane.b32.xlu0 %v34, 109
  %v702 = vpop.permute.xlu0 %701
  %703 = vrot.lane.b32.xlu0 %v35, 109
  %v704 = vpop.permute.xlu0 %703
  %705 = vrot.lane.b32.xlu0 %v36, 109
  %v706 = vpop.permute.xlu0 %705
  %707 = vrot.lane.b32.xlu0 %v37, 109
  %v708 = vpop.permute.xlu0 %707
  %709 = vrot.lane.b32.xlu0 %v38, 109
  %v710 = vpop.permute.xlu0 %709
  %711 = vrot.lane.b32.xlu0 %v39, 109
  %v712 = vpop.permute.xlu0 %711
  %vm713 = vcmask 891904
  %v714 = vsel %vm713, %v700, %v702
  %v715 = vsel %vm713, %v702, %v704
  %v716 = vsel %vm713, %v704, %v706
  %v717 = vsel %vm713, %v706, %v708
  %v718 = vsel %vm713, %v708, %v710
  %v719 = vsel %vm713, %v710, %v712
  %v721 = vsel %vm61, %v698, 0
  %v724 = vsel %vm65, %v714, 0
  %v727 = vsel %vm65, %v715, 0
  %v730 = vsel %vm65, %v716, 0
  %v733 = vsel %vm65, %v717, 0
  %v736 = vsel %vm65, %v718, 0
  %v739 = vsel %vm65, %v719, 0
  %741 = vmatprep.subr.bf16.mxu0 %v727
  %742 = vmatpush1.bf16.msra.mxu0 %v724
  %743 = vmatprep.subr.bf16.mxu0 0
  %744 = vmatpush1.bf16.msra.mxu0 0
  %745 = vmatprep.subr.bf16.mxu0 0
  %746 = vmatpush1.bf16.msra.mxu0 0
  %747 = vmatprep.subr.bf16.mxu0 0
  %748 = vmatpush1.bf16.msra.mxu0 0
  %749 = vmatprep.subr.bf16.mxu0 0
  %750 = vmatpush1.bf16.msra.mxu0 0
  %751 = vmatprep.subr.bf16.mxu0 0
  %752 = vmatpush1.bf16.msra.mxu0 0
  %753 = vmatprep.subr.bf16.mxu0 0
  %754 = vmatpush1.bf16.msra.mxu0 0
  %755 = vmatprep.subr.bf16.mxu0 0
  %756 = vmatpush1.bf16.msra.mxu0 0
  %757 = vmatprep.subr.bf16.mxu0 0
  %758 = vmatpush1.bf16.msra.mxu0 0
  %759 = vmatprep.subr.bf16.mxu0 0
  %760 = vmatpush1.bf16.msra.mxu0 0
  %761 = vmatprep.subr.bf16.mxu0 0
  %762 = vmatpush1.bf16.msra.mxu0 0
  %763 = vmatprep.subr.bf16.mxu0 0
  %764 = vmatpush1.bf16.msra.mxu0 0
  %765 = vmatprep.subr.bf16.mxu0 0
  %766 = vmatpush1.bf16.msra.mxu0 0
  %767 = vmatprep.subr.bf16.mxu0 0
  %768 = vmatpush1.bf16.msra.mxu0 0
  %769 = vmatprep.subr.bf16.mxu0 0
  %770 = vmatpush1.bf16.msra.mxu0 0
  %771 = vmatprep.subr.bf16.mxu0 0
  %772 = vmatpush1.bf16.msra.mxu0 0
  %773 = vmatprep.mubr.bf16.mxu0 0
  %774 = vmatmul.mubr.bf16.gmra.mrb[0].mxu0 %v721
  %v775 = vpop.f32.mrb[0].mxu0
  %v776 = vadd.f32 0.0, %v775
  %v777 = vpop.f32.mrb[0].mxu0
  %v778 = vadd.f32 0.0, %v777
  %v779 = vpop.f32.mrb[0].mxu0
  %v780 = vpop.f32.mrb[0].mxu0
  %781 = vdwg.mxu0
  %782 = vmatprep.subr.bf16.mxu0 %v733
  %783 = vmatpush1.bf16.msra.mxu0 %v730
  %784 = vmatprep.subr.bf16.mxu0 0
  %785 = vmatpush1.bf16.msra.mxu0 0
  %786 = vmatprep.subr.bf16.mxu0 0
  %787 = vmatpush1.bf16.msra.mxu0 0
  %788 = vmatprep.subr.bf16.mxu0 0
  %789 = vmatpush1.bf16.msra.mxu0 0
  %790 = vmatprep.subr.bf16.mxu0 0
  %791 = vmatpush1.bf16.msra.mxu0 0
  %792 = vmatprep.subr.bf16.mxu0 0
  %793 = vmatpush1.bf16.msra.mxu0 0
  %794 = vmatprep.subr.bf16.mxu0 0
  %795 = vmatpush1.bf16.msra.mxu0 0
  %796 = vmatprep.subr.bf16.mxu0 0
  %797 = vmatpush1.bf16.msra.mxu0 0
  %798 = vmatprep.subr.bf16.mxu0 0
  %799 = vmatpush1.bf16.msra.mxu0 0
  %800 = vmatprep.subr.bf16.mxu0 0
  %801 = vmatpush1.bf16.msra.mxu0 0
  %802 = vmatprep.subr.bf16.mxu0 0
  %803 = vmatpush1.bf16.msra.mxu0 0
  %804 = vmatprep.subr.bf16.mxu0 0
  %805 = vmatpush1.bf16.msra.mxu0 0
  %806 = vmatprep.subr.bf16.mxu0 0
  %807 = vmatpush1.bf16.msra.mxu0 0
  %808 = vmatprep.subr.bf16.mxu0 0
  %809 = vmatpush1.bf16.msra.mxu0 0
  %810 = vmatprep.subr.bf16.mxu0 0
  %811 = vmatpush1.bf16.msra.mxu0 0
  %812 = vmatprep.subr.bf16.mxu0 0
  %813 = vmatpush1.bf16.msra.mxu0 0
  %814 = vmatprep.mubr.bf16.mxu0 0
  %815 = vmatmul.mubr.bf16.gmra.mrb[0].mxu0 %v721
  %v816 = vpop.f32.mrb[0].mxu0
  %v817 = vadd.f32 0.0, %v816
  %v818 = vpop.f32.mrb[0].mxu0
  %v819 = vadd.f32 0.0, %v818
  %v820 = vpop.f32.mrb[0].mxu0
  %v821 = vpop.f32.mrb[0].mxu0
  %822 = vdwg.mxu0
  %823 = vmatprep.subr.bf16.mxu0 %v739
  %824 = vmatpush1.bf16.msra.mxu0 %v736
  %825 = vmatprep.subr.bf16.mxu0 0
  %826 = vmatpush1.bf16.msra.mxu0 0
  %827 = vmatprep.subr.bf16.mxu0 0
  %828 = vmatpush1.bf16.msra.mxu0 0
  %829 = vmatprep.subr.bf16.mxu0 0
  %830 = vmatpush1.bf16.msra.mxu0 0
  %831 = vmatprep.subr.bf16.mxu0 0
  %832 = vmatpush1.bf16.msra.mxu0 0
  %833 = vmatprep.subr.bf16.mxu0 0
  %834 = vmatpush1.bf16.msra.mxu0 0
  %835 = vmatprep.subr.bf16.mxu0 0
  %836 = vmatpush1.bf16.msra.mxu0 0
  %837 = vmatprep.subr.bf16.mxu0 0
  %838 = vmatpush1.bf16.msra.mxu0 0
  %839 = vmatprep.subr.bf16.mxu0 0
  %840 = vmatpush1.bf16.msra.mxu0 0
  %841 = vmatprep.subr.bf16.mxu0 0
  %842 = vmatpush1.bf16.msra.mxu0 0
  %843 = vmatprep.subr.bf16.mxu0 0
  %844 = vmatpush1.bf16.msra.mxu0 0
  %845 = vmatprep.subr.bf16.mxu0 0
  %846 = vmatpush1.bf16.msra.mxu0 0
  %847 = vmatprep.subr.bf16.mxu0 0
  %848 = vmatpush1.bf16.msra.mxu0 0
  %849 = vmatprep.subr.bf16.mxu0 0
  %850 = vmatpush1.bf16.msra.mxu0 0
  %851 = vmatprep.subr.bf16.mxu0 0
  %852 = vmatpush1.bf16.msra.mxu0 0
  %853 = vmatprep.subr.bf16.mxu0 0
  %854 = vmatpush1.bf16.msra.mxu0 0
  %855 = vmatprep.mubr.bf16.mxu0 0
  %856 = vmatmul.mubr.bf16.gmra.mrb[0].mxu0 %v721
  %v857 = vpop.f32.mrb[0].mxu0
  %v858 = vadd.f32 0.0, %v857
  %v859 = vpop.f32.mrb[0].mxu0
  %v860 = vadd.f32 0.0, %v859
  %v861 = vpop.f32.mrb[0].mxu0
  %v862 = vpop.f32.mrb[0].mxu0
  %863 = vdwg.mxu0
  %v864 = vadd.f32 %v691, %v776
  %v865 = vadd.f32 %v692, %v778
  %v866 = vadd.f32 %v693, %v817
  %v867 = vadd.f32 %v694, %v819
  %v868 = vadd.f32 %v695, %v858
  %v869 = vadd.f32 %v696, %v860
  %s870 = scalar_lea.vmem %s1, 20
  %v871 = vld [vmem:[%s870] sm:$0xf]
  %872 = vrot.lane.b32.xlu0 %v33, 108
  %v873 = vpop.permute.xlu0 %872
  %874 = vrot.lane.b32.xlu0 %v34, 108
  %v875 = vpop.permute.xlu0 %874
  %876 = vrot.lane.b32.xlu0 %v35, 108
  %v877 = vpop.permute.xlu0 %876
  %878 = vrot.lane.b32.xlu0 %v36, 108
  %v879 = vpop.permute.xlu0 %878
  %880 = vrot.lane.b32.xlu0 %v37, 108
  %v881 = vpop.permute.xlu0 %880
  %882 = vrot.lane.b32.xlu0 %v38, 108
  %v883 = vpop.permute.xlu0 %882
  %884 = vrot.lane.b32.xlu0 %v39, 108
  %v885 = vpop.permute.xlu0 %884
  %vm886 = vcmask 883712
  %v887 = vsel %vm886, %v873, %v875
  %v888 = vsel %vm886, %v875, %v877
  %v889 = vsel %vm886, %v877, %v879
  %v890 = vsel %vm886, %v879, %v881
  %v891 = vsel %vm886, %v881, %v883
  %v892 = vsel %vm886, %v883, %v885
  %v894 = vsel %vm61, %v871, 0
  %v897 = vsel %vm65, %v887, 0
  %v900 = vsel %vm65, %v888, 0
  %v903 = vsel %vm65, %v889, 0
  %v906 = vsel %vm65, %v890, 0
  %v909 = vsel %vm65, %v891, 0
  %v912 = vsel %vm65, %v892, 0
  %914 = vmatprep.subr.bf16.mxu0 %v900
  %915 = vmatpush1.bf16.msra.mxu0 %v897
  %916 = vmatprep.subr.bf16.mxu0 0
  %917 = vmatpush1.bf16.msra.mxu0 0
  %918 = vmatprep.subr.bf16.mxu0 0
  %919 = vmatpush1.bf16.msra.mxu0 0
  %920 = vmatprep.subr.bf16.mxu0 0
  %921 = vmatpush1.bf16.msra.mxu0 0
  %922 = vmatprep.subr.bf16.mxu0 0
  %923 = vmatpush1.bf16.msra.mxu0 0
  %924 = vmatprep.subr.bf16.mxu0 0
  %925 = vmatpush1.bf16.msra.mxu0 0
  %926 = vmatprep.subr.bf16.mxu0 0
  %927 = vmatpush1.bf16.msra.mxu0 0
  %928 = vmatprep.subr.bf16.mxu0 0
  %929 = vmatpush1.bf16.msra.mxu0 0
  %930 = vmatprep.subr.bf16.mxu0 0
  %931 = vmatpush1.bf16.msra.mxu0 0
  %932 = vmatprep.subr.bf16.mxu0 0
  %933 = vmatpush1.bf16.msra.mxu0 0
  %934 = vmatprep.subr.bf16.mxu0 0
  %935 = vmatpush1.bf16.msra.mxu0 0
  %936 = vmatprep.subr.bf16.mxu0 0
  %937 = vmatpush1.bf16.msra.mxu0 0
  %938 = vmatprep.subr.bf16.mxu0 0
  %939 = vmatpush1.bf16.msra.mxu0 0
  %940 = vmatprep.subr.bf16.mxu0 0
  %941 = vmatpush1.bf16.msra.mxu0 0
  %942 = vmatprep.subr.bf16.mxu0 0
  %943 = vmatpush1.bf16.msra.mxu0 0
  %944 = vmatprep.subr.bf16.mxu0 0
  %945 = vmatpush1.bf16.msra.mxu0 0
  %946 = vmatprep.mubr.bf16.mxu0 0
  %947 = vmatmul.mubr.bf16.gmra.mrb[0].mxu0 %v894
  %v948 = vpop.f32.mrb[0].mxu0
  %v949 = vadd.f32 0.0, %v948
  %v950 = vpop.f32.mrb[0].mxu0
  %v951 = vadd.f32 0.0, %v950
  %v952 = vpop.f32.mrb[0].mxu0
  %v953 = vpop.f32.mrb[0].mxu0
  %954 = vdwg.mxu0
  %955 = vmatprep.subr.bf16.mxu0 %v906
  %956 = vmatpush1.bf16.msra.mxu0 %v903
  %957 = vmatprep.subr.bf16.mxu0 0
  %958 = vmatpush1.bf16.msra.mxu0 0
  %959 = vmatprep.subr.bf16.mxu0 0
  %960 = vmatpush1.bf16.msra.mxu0 0
  %961 = vmatprep.subr.bf16.mxu0 0
  %962 = vmatpush1.bf16.msra.mxu0 0
  %963 = vmatprep.subr.bf16.mxu0 0
  %964 = vmatpush1.bf16.msra.mxu0 0
  %965 = vmatprep.subr.bf16.mxu0 0
  %966 = vmatpush1.bf16.msra.mxu0 0
  %967 = vmatprep.subr.bf16.mxu0 0
  %968 = vmatpush1.bf16.msra.mxu0 0
  %969 = vmatprep.subr.bf16.mxu0 0
  %970 = vmatpush1.bf16.msra.mxu0 0
  %971 = vmatprep.subr.bf16.mxu0 0
  %972 = vmatpush1.bf16.msra.mxu0 0
  %973 = vmatprep.subr.bf16.mxu0 0
  %974 = vmatpush1.bf16.msra.mxu0 0
  %975 = vmatprep.subr.bf16.mxu0 0
  %976 = vmatpush1.bf16.msra.mxu0 0
  %977 = vmatprep.subr.bf16.mxu0 0
  %978 = vmatpush1.bf16.msra.mxu0 0
  %979 = vmatprep.subr.bf16.mxu0 0
  %980 = vmatpush1.bf16.msra.mxu0 0
  %981 = vmatprep.subr.bf16.mxu0 0
  %982 = vmatpush1.bf16.msra.mxu0 0
  %983 = vmatprep.subr.bf16.mxu0 0
  %984 = vmatpush1.bf16.msra.mxu0 0
  %985 = vmatprep.subr.bf16.mxu0 0
  %986 = vmatpush1.bf16.msra.mxu0 0
  %987 = vmatprep.mubr.bf16.mxu0 0
  %988 = vmatmul.mubr.bf16.gmra.mrb[0].mxu0 %v894
  %v989 = vpop.f32.mrb[0].mxu0
  %v990 = vadd.f32 0.0, %v989
  %v991 = vpop.f32.mrb[0].mxu0
  %v992 = vadd.f32 0.0, %v991
  %v993 = vpop.f32.mrb[0].mxu0
  %v994 = vpop.f32.mrb[0].mxu0
  %995 = vdwg.mxu0
  %996 = vmatprep.subr.bf16.mxu0 %v912
  %997 = vmatpush1.bf16.msra.mxu0 %v909
  %998 = vmatprep.subr.bf16.mxu0 0
  %999 = vmatpush1.bf16.msra.mxu0 0
  %1000 = vmatprep.subr.bf16.mxu0 0
  %1001 = vmatpush1.bf16.msra.mxu0 0
  %1002 = vmatprep.subr.bf16.mxu0 0
  %1003 = vmatpush1.bf16.msra.mxu0 0
  %1004 = vmatprep.subr.bf16.mxu0 0
  %1005 = vmatpush1.bf16.msra.mxu0 0
  %1006 = vmatprep.subr.bf16.mxu0 0
  %1007 = vmatpush1.bf16.msra.mxu0 0
  %1008 = vmatprep.subr.bf16.mxu0 0
  %1009 = vmatpush1.bf16.msra.mxu0 0
  %1010 = vmatprep.subr.bf16.mxu0 0
  %1011 = vmatpush1.bf16.msra.mxu0 0
  %1012 = vmatprep.subr.bf16.mxu0 0
  %1013 = vmatpush1.bf16.msra.mxu0 0
  %1014 = vmatprep.subr.bf16.mxu0 0
  %1015 = vmatpush1.bf16.msra.mxu0 0
  %1016 = vmatprep.subr.bf16.mxu0 0
  %1017 = vmatpush1.bf16.msra.mxu0 0
  %1018 = vmatprep.subr.bf16.mxu0 0
  %1019 = vmatpush1.bf16.msra.mxu0 0
  %1020 = vmatprep.subr.bf16.mxu0 0
  %1021 = vmatpush1.bf16.msra.mxu0 0
  %1022 = vmatprep.subr.bf16.mxu0 0
  %1023 = vmatpush1.bf16.msra.mxu0 0
  %1024 = vmatprep.subr.bf16.mxu0 0
  %1025 = vmatpush1.bf16.msra.mxu0 0
  %1026 = vmatprep.subr.bf16.mxu0 0
  %1027 = vmatpush1.bf16.msra.mxu0 0
  %1028 = vmatprep.mubr.bf16.mxu0 0
  %1029 = vmatmul.mubr.bf16.gmra.mrb[0].mxu0 %v894
  %v1030 = vpop.f32.mrb[0].mxu0
  %v1031 = vadd.f32 0.0, %v1030
  %v1032 = vpop.f32.mrb[0].mxu0
  %v1033 = vadd.f32 0.0, %v1032
  %v1034 = vpop.f32.mrb[0].mxu0
  %v1035 = vpop.f32.mrb[0].mxu0
  %1036 = vdwg.mxu0
  %v1037 = vadd.f32 %v864, %v949
  %v1038 = vadd.f32 %v865, %v951
  %v1039 = vadd.f32 %v866, %v990
  %v1040 = vadd.f32 %v867, %v992
  %v1041 = vadd.f32 %v868, %v1031
  %v1042 = vadd.f32 %v869, %v1033
  %s1043 = scalar_lea.vmem %s1, 24
  %v1044 = vld [vmem:[%s1043] sm:$0xf]
  %1045 = vrot.lane.b32.xlu0 %v33, 92
  %v1046 = vpop.permute.xlu0 %1045
  %1047 = vrot.lane.b32.xlu0 %v34, 92
  %v1048 = vpop.permute.xlu0 %1047
  %1049 = vrot.lane.b32.xlu0 %v35, 92
  %v1050 = vpop.permute.xlu0 %1049
  %1051 = vrot.lane.b32.xlu0 %v36, 92
  %v1052 = vpop.permute.xlu0 %1051
  %1053 = vrot.lane.b32.xlu0 %v37, 92
  %v1054 = vpop.permute.xlu0 %1053
  %1055 = vrot.lane.b32.xlu0 %v38, 92
  %v1056 = vpop.permute.xlu0 %1055
  %1057 = vrot.lane.b32.xlu0 %v39, 92
  %v1058 = vpop.permute.xlu0 %1057
  %vm1059 = vcmask 752640
  %v1060 = vsel %vm1059, %v1046, %v1048
  %v1061 = vsel %vm1059, %v1048, %v1050
  %v1062 = vsel %vm1059, %v1050, %v1052
  %v1063 = vsel %vm1059, %v1052, %v1054
  %v1064 = vsel %vm1059, %v1054, %v1056
  %v1065 = vsel %vm1059, %v1056, %v1058
  %v1067 = vsel %vm61, %v1044, 0
  %v1070 = vsel %vm65, %v1060, 0
  %v1073 = vsel %vm65, %v1061, 0
  %v1076 = vsel %vm65, %v1062, 0
  %v1079 = vsel %vm65, %v1063, 0
  %v1082 = vsel %vm65, %v1064, 0
  %v1085 = vsel %vm65, %v1065, 0
  %1087 = vmatprep.subr.bf16.mxu0 %v1073
  %1088 = vmatpush1.bf16.msra.mxu0 %v1070
  %1089 = vmatprep.subr.bf16.mxu0 0
  %1090 = vmatpush1.bf16.msra.mxu0 0
  %1091 = vmatprep.subr.bf16.mxu0 0
  %1092 = vmatpush1.bf16.msra.mxu0 0
  %1093 = vmatprep.subr.bf16.mxu0 0
  %1094 = vmatpush1.bf16.msra.mxu0 0
  %1095 = vmatprep.subr.bf16.mxu0 0
  %1096 = vmatpush1.bf16.msra.mxu0 0
  %1097 = vmatprep.subr.bf16.mxu0 0
  %1098 = vmatpush1.bf16.msra.mxu0 0
  %1099 = vmatprep.subr.bf16.mxu0 0
  %1100 = vmatpush1.bf16.msra.mxu0 0
  %1101 = vmatprep.subr.bf16.mxu0 0
  %1102 = vmatpush1.bf16.msra.mxu0 0
  %1103 = vmatprep.subr.bf16.mxu0 0
  %1104 = vmatpush1.bf16.msra.mxu0 0
  %1105 = vmatprep.subr.bf16.mxu0 0
  %1106 = vmatpush1.bf16.msra.mxu0 0
  %1107 = vmatprep.subr.bf16.mxu0 0
  %1108 = vmatpush1.bf16.msra.mxu0 0
  %1109 = vmatprep.subr.bf16.mxu0 0
  %1110 = vmatpush1.bf16.msra.mxu0 0
  %1111 = vmatprep.subr.bf16.mxu0 0
  %1112 = vmatpush1.bf16.msra.mxu0 0
  %1113 = vmatprep.subr.bf16.mxu0 0
  %1114 = vmatpush1.bf16.msra.mxu0 0
  %1115 = vmatprep.subr.bf16.mxu0 0
  %1116 = vmatpush1.bf16.msra.mxu0 0
  %1117 = vmatprep.subr.bf16.mxu0 0
  %1118 = vmatpush1.bf16.msra.mxu0 0
  %1119 = vmatprep.mubr.bf16.mxu0 0
  %1120 = vmatmul.mubr.bf16.gmra.mrb[0].mxu0 %v1067
  %v1121 = vpop.f32.mrb[0].mxu0
  %v1122 = vadd.f32 0.0, %v1121
  %v1123 = vpop.f32.mrb[0].mxu0
  %v1124 = vadd.f32 0.0, %v1123
  %v1125 = vpop.f32.mrb[0].mxu0
  %v1126 = vpop.f32.mrb[0].mxu0
  %1127 = vdwg.mxu0
  %1128 = vmatprep.subr.bf16.mxu0 %v1079
  %1129 = vmatpush1.bf16.msra.mxu0 %v1076
  %1130 = vmatprep.subr.bf16.mxu0 0
  %1131 = vmatpush1.bf16.msra.mxu0 0
  %1132 = vmatprep.subr.bf16.mxu0 0
  %1133 = vmatpush1.bf16.msra.mxu0 0
  %1134 = vmatprep.subr.bf16.mxu0 0
  %1135 = vmatpush1.bf16.msra.mxu0 0
  %1136 = vmatprep.subr.bf16.mxu0 0
  %1137 = vmatpush1.bf16.msra.mxu0 0
  %1138 = vmatprep.subr.bf16.mxu0 0
  %1139 = vmatpush1.bf16.msra.mxu0 0
  %1140 = vmatprep.subr.bf16.mxu0 0
  %1141 = vmatpush1.bf16.msra.mxu0 0
  %1142 = vmatprep.subr.bf16.mxu0 0
  %1143 = vmatpush1.bf16.msra.mxu0 0
  %1144 = vmatprep.subr.bf16.mxu0 0
  %1145 = vmatpush1.bf16.msra.mxu0 0
  %1146 = vmatprep.subr.bf16.mxu0 0
  %1147 = vmatpush1.bf16.msra.mxu0 0
  %1148 = vmatprep.subr.bf16.mxu0 0
  %1149 = vmatpush1.bf16.msra.mxu0 0
  %1150 = vmatprep.subr.bf16.mxu0 0
  %1151 = vmatpush1.bf16.msra.mxu0 0
  %1152 = vmatprep.subr.bf16.mxu0 0
  %1153 = vmatpush1.bf16.msra.mxu0 0
  %1154 = vmatprep.subr.bf16.mxu0 0
  %1155 = vmatpush1.bf16.msra.mxu0 0
  %1156 = vmatprep.subr.bf16.mxu0 0
  %1157 = vmatpush1.bf16.msra.mxu0 0
  %1158 = vmatprep.subr.bf16.mxu0 0
  %1159 = vmatpush1.bf16.msra.mxu0 0
  %1160 = vmatprep.mubr.bf16.mxu0 0
  %1161 = vmatmul.mubr.bf16.gmra.mrb[0].mxu0 %v1067
  %v1162 = vpop.f32.mrb[0].mxu0
  %v1163 = vadd.f32 0.0, %v1162
  %v1164 = vpop.f32.mrb[0].mxu0
  %v1165 = vadd.f32 0.0, %v1164
  %v1166 = vpop.f32.mrb[0].mxu0
  %v1167 = vpop.f32.mrb[0].mxu0
  %1168 = vdwg.mxu0
  %1169 = vmatprep.subr.bf16.mxu0 %v1085
  %1170 = vmatpush1.bf16.msra.mxu0 %v1082
  %1171 = vmatprep.subr.bf16.mxu0 0
  %1172 = vmatpush1.bf16.msra.mxu0 0
  %1173 = vmatprep.subr.bf16.mxu0 0
  %1174 = vmatpush1.bf16.msra.mxu0 0
  %1175 = vmatprep.subr.bf16.mxu0 0
  %1176 = vmatpush1.bf16.msra.mxu0 0
  %1177 = vmatprep.subr.bf16.mxu0 0
  %1178 = vmatpush1.bf16.msra.mxu0 0
  %1179 = vmatprep.subr.bf16.mxu0 0
  %1180 = vmatpush1.bf16.msra.mxu0 0
  %1181 = vmatprep.subr.bf16.mxu0 0
  %1182 = vmatpush1.bf16.msra.mxu0 0
  %1183 = vmatprep.subr.bf16.mxu0 0
  %1184 = vmatpush1.bf16.msra.mxu0 0
  %1185 = vmatprep.subr.bf16.mxu0 0
  %1186 = vmatpush1.bf16.msra.mxu0 0
  %1187 = vmatprep.subr.bf16.mxu0 0
  %1188 = vmatpush1.bf16.msra.mxu0 0
  %1189 = vmatprep.subr.bf16.mxu0 0
  %1190 = vmatpush1.bf16.msra.mxu0 0
  %1191 = vmatprep.subr.bf16.mxu0 0
  %1192 = vmatpush1.bf16.msra.mxu0 0
  %1193 = vmatprep.subr.bf16.mxu0 0
  %1194 = vmatpush1.bf16.msra.mxu0 0
  %1195 = vmatprep.subr.bf16.mxu0 0
  %1196 = vmatpush1.bf16.msra.mxu0 0
  %1197 = vmatprep.subr.bf16.mxu0 0
  %1198 = vmatpush1.bf16.msra.mxu0 0
  %1199 = vmatprep.subr.bf16.mxu0 0
  %1200 = vmatpush1.bf16.msra.mxu0 0
  %1201 = vmatprep.mubr.bf16.mxu0 0
  %1202 = vmatmul.mubr.bf16.gmra.mrb[0].mxu0 %v1067
  %v1203 = vpop.f32.mrb[0].mxu0
  %v1204 = vadd.f32 0.0, %v1203
  %v1205 = vpop.f32.mrb[0].mxu0
  %v1206 = vadd.f32 0.0, %v1205
  %v1207 = vpop.f32.mrb[0].mxu0
  %v1208 = vpop.f32.mrb[0].mxu0
  %1209 = vdwg.mxu0
  %v1210 = vadd.f32 %v1037, %v1122
  %v1211 = vadd.f32 %v1038, %v1124
  %v1212 = vadd.f32 %v1039, %v1163
  %v1213 = vadd.f32 %v1040, %v1165
  %v1214 = vadd.f32 %v1041, %v1204
  %v1215 = vadd.f32 %v1042, %v1206
  %s1216 = scalar_lea.vmem %s1, 28
  %v1217 = vld [vmem:[%s1216] sm:$0xf]
  %1218 = vrot.lane.b32.xlu0 %v33, 91
  %v1219 = vpop.permute.xlu0 %1218
  %1220 = vrot.lane.b32.xlu0 %v34, 91
  %v1221 = vpop.permute.xlu0 %1220
  %1222 = vrot.lane.b32.xlu0 %v35, 91
  %v1223 = vpop.permute.xlu0 %1222
  %1224 = vrot.lane.b32.xlu0 %v36, 91
  %v1225 = vpop.permute.xlu0 %1224
  %1226 = vrot.lane.b32.xlu0 %v37, 91
  %v1227 = vpop.permute.xlu0 %1226
  %1228 = vrot.lane.b32.xlu0 %v38, 91
  %v1229 = vpop.permute.xlu0 %1228
  %1230 = vrot.lane.b32.xlu0 %v39, 91
  %v1231 = vpop.permute.xlu0 %1230
  %vm1232 = vcmask 744448
  %v1233 = vsel %vm1232, %v1219, %v1221
  %v1234 = vsel %vm1232, %v1221, %v1223
  %v1235 = vsel %vm1232, %v1223, %v1225
  %v1236 = vsel %vm1232, %v1225, %v1227
  %v1237 = vsel %vm1232, %v1227, %v1229
  %v1238 = vsel %vm1232, %v1229, %v1231
  %v1240 = vsel %vm61, %v1217, 0
  %v1243 = vsel %vm65, %v1233, 0
  %v1246 = vsel %vm65, %v1234, 0
  %v1249 = vsel %vm65, %v1235, 0
  %v1252 = vsel %vm65, %v1236, 0
  %v1255 = vsel %vm65, %v1237, 0
  %v1258 = vsel %vm65, %v1238, 0
  %1260 = vmatprep.subr.bf16.mxu0 %v1246
  %1261 = vmatpush1.bf16.msra.mxu0 %v1243
  %1262 = vmatprep.subr.bf16.mxu0 0
  %1263 = vmatpush1.bf16.msra.mxu0 0
  %1264 = vmatprep.subr.bf16.mxu0 0
  %1265 = vmatpush1.bf16.msra.mxu0 0
  %1266 = vmatprep.subr.bf16.mxu0 0
  %1267 = vmatpush1.bf16.msra.mxu0 0
  %1268 = vmatprep.subr.bf16.mxu0 0
  %1269 = vmatpush1.bf16.msra.mxu0 0
  %1270 = vmatprep.subr.bf16.mxu0 0
  %1271 = vmatpush1.bf16.msra.mxu0 0
  %1272 = vmatprep.subr.bf16.mxu0 0
  %1273 = vmatpush1.bf16.msra.mxu0 0
  %1274 = vmatprep.subr.bf16.mxu0 0
  %1275 = vmatpush1.bf16.msra.mxu0 0
  %1276 = vmatprep.subr.bf16.mxu0 0
  %1277 = vmatpush1.bf16.msra.mxu0 0
  %1278 = vmatprep.subr.bf16.mxu0 0
  %1279 = vmatpush1.bf16.msra.mxu0 0
  %1280 = vmatprep.subr.bf16.mxu0 0
  %1281 = vmatpush1.bf16.msra.mxu0 0
  %1282 = vmatprep.subr.bf16.mxu0 0
  %1283 = vmatpush1.bf16.msra.mxu0 0
  %1284 = vmatprep.subr.bf16.mxu0 0
  %1285 = vmatpush1.bf16.msra.mxu0 0
  %1286 = vmatprep.subr.bf16.mxu0 0
  %1287 = vmatpush1.bf16.msra.mxu0 0
  %1288 = vmatprep.subr.bf16.mxu0 0
  %1289 = vmatpush1.bf16.msra.mxu0 0
  %1290 = vmatprep.subr.bf16.mxu0 0
  %1291 = vmatpush1.bf16.msra.mxu0 0
  %1292 = vmatprep.mubr.bf16.mxu0 0
  %1293 = vmatmul.mubr.bf16.gmra.mrb[0].mxu0 %v1240
  %v1294 = vpop.f32.mrb[0].mxu0
  %v1295 = vadd.f32 0.0, %v1294
  %v1296 = vpop.f32.mrb[0].mxu0
  %v1297 = vadd.f32 0.0, %v1296
  %v1298 = vpop.f32.mrb[0].mxu0
  %v1299 = vpop.f32.mrb[0].mxu0
  %1300 = vdwg.mxu0
  %1301 = vmatprep.subr.bf16.mxu0 %v1252
  %1302 = vmatpush1.bf16.msra.mxu0 %v1249
  %1303 = vmatprep.subr.bf16.mxu0 0
  %1304 = vmatpush1.bf16.msra.mxu0 0
  %1305 = vmatprep.subr.bf16.mxu0 0
  %1306 = vmatpush1.bf16.msra.mxu0 0
  %1307 = vmatprep.subr.bf16.mxu0 0
  %1308 = vmatpush1.bf16.msra.mxu0 0
  %1309 = vmatprep.subr.bf16.mxu0 0
  %1310 = vmatpush1.bf16.msra.mxu0 0
  %1311 = vmatprep.subr.bf16.mxu0 0
  %1312 = vmatpush1.bf16.msra.mxu0 0
  %1313 = vmatprep.subr.bf16.mxu0 0
  %1314 = vmatpush1.bf16.msra.mxu0 0
  %1315 = vmatprep.subr.bf16.mxu0 0
  %1316 = vmatpush1.bf16.msra.mxu0 0
  %1317 = vmatprep.subr.bf16.mxu0 0
  %1318 = vmatpush1.bf16.msra.mxu0 0
  %1319 = vmatprep.subr.bf16.mxu0 0
  %1320 = vmatpush1.bf16.msra.mxu0 0
  %1321 = vmatprep.subr.bf16.mxu0 0
  %1322 = vmatpush1.bf16.msra.mxu0 0
  %1323 = vmatprep.subr.bf16.mxu0 0
  %1324 = vmatpush1.bf16.msra.mxu0 0
  %1325 = vmatprep.subr.bf16.mxu0 0
  %1326 = vmatpush1.bf16.msra.mxu0 0
  %1327 = vmatprep.subr.bf16.mxu0 0
  %1328 = vmatpush1.bf16.msra.mxu0 0
  %1329 = vmatprep.subr.bf16.mxu0 0
  %1330 = vmatpush1.bf16.msra.mxu0 0
  %1331 = vmatprep.subr.bf16.mxu0 0
  %1332 = vmatpush1.bf16.msra.mxu0 0
  %1333 = vmatprep.mubr.bf16.mxu0 0
  %1334 = vmatmul.mubr.bf16.gmra.mrb[0].mxu0 %v1240
  %v1335 = vpop.f32.mrb[0].mxu0
  %v1336 = vadd.f32 0.0, %v1335
  %v1337 = vpop.f32.mrb[0].mxu0
  %v1338 = vadd.f32 0.0, %v1337
  %v1339 = vpop.f32.mrb[0].mxu0
  %v1340 = vpop.f32.mrb[0].mxu0
  %1341 = vdwg.mxu0
  %1342 = vmatprep.subr.bf16.mxu0 %v1258
  %1343 = vmatpush1.bf16.msra.mxu0 %v1255
  %1344 = vmatprep.subr.bf16.mxu0 0
  %1345 = vmatpush1.bf16.msra.mxu0 0
  %1346 = vmatprep.subr.bf16.mxu0 0
  %1347 = vmatpush1.bf16.msra.mxu0 0
  %1348 = vmatprep.subr.bf16.mxu0 0
  %1349 = vmatpush1.bf16.msra.mxu0 0
  %1350 = vmatprep.subr.bf16.mxu0 0
  %1351 = vmatpush1.bf16.msra.mxu0 0
  %1352 = vmatprep.subr.bf16.mxu0 0
  %1353 = vmatpush1.bf16.msra.mxu0 0
  %1354 = vmatprep.subr.bf16.mxu0 0
  %1355 = vmatpush1.bf16.msra.mxu0 0
  %1356 = vmatprep.subr.bf16.mxu0 0
  %1357 = vmatpush1.bf16.msra.mxu0 0
  %1358 = vmatprep.subr.bf16.mxu0 0
  %1359 = vmatpush1.bf16.msra.mxu0 0
  %1360 = vmatprep.subr.bf16.mxu0 0
  %1361 = vmatpush1.bf16.msra.mxu0 0
  %1362 = vmatprep.subr.bf16.mxu0 0
  %1363 = vmatpush1.bf16.msra.mxu0 0
  %1364 = vmatprep.subr.bf16.mxu0 0
  %1365 = vmatpush1.bf16.msra.mxu0 0
  %1366 = vmatprep.subr.bf16.mxu0 0
  %1367 = vmatpush1.bf16.msra.mxu0 0
  %1368 = vmatprep.subr.bf16.mxu0 0
  %1369 = vmatpush1.bf16.msra.mxu0 0
  %1370 = vmatprep.subr.bf16.mxu0 0
  %1371 = vmatpush1.bf16.msra.mxu0 0
  %1372 = vmatprep.subr.bf16.mxu0 0
  %1373 = vmatpush1.bf16.msra.mxu0 0
  %1374 = vmatprep.mubr.bf16.mxu0 0
  %1375 = vmatmul.mubr.bf16.gmra.mrb[0].mxu0 %v1240
  %v1376 = vpop.f32.mrb[0].mxu0
  %v1377 = vadd.f32 0.0, %v1376
  %v1378 = vpop.f32.mrb[0].mxu0
  %v1379 = vadd.f32 0.0, %v1378
  %v1380 = vpop.f32.mrb[0].mxu0
  %v1381 = vpop.f32.mrb[0].mxu0
  %1382 = vdwg.mxu0
  %v1383 = vadd.f32 %v1210, %v1295
  %v1384 = vadd.f32 %v1211, %v1297
  %v1385 = vadd.f32 %v1212, %v1336
  %v1386 = vadd.f32 %v1213, %v1338
  %v1387 = vadd.f32 %v1214, %v1377
  %v1388 = vadd.f32 %v1215, %v1379
  %s1389 = scalar_lea.vmem %s1, 32
  %v1390 = vld [vmem:[%s1389] sm:$0xf]
  %1391 = vrot.lane.b32.xlu0 %v33, 90
  %v1392 = vpop.permute.xlu0 %1391
  %1393 = vrot.lane.b32.xlu0 %v34, 90
  %v1394 = vpop.permute.xlu0 %1393
  %1395 = vrot.lane.b32.xlu0 %v35, 90
  %v1396 = vpop.permute.xlu0 %1395
  %1397 = vrot.lane.b32.xlu0 %v36, 90
  %v1398 = vpop.permute.xlu0 %1397
  %1399 = vrot.lane.b32.xlu0 %v37, 90
  %v1400 = vpop.permute.xlu0 %1399
  %1401 = vrot.lane.b32.xlu0 %v38, 90
  %v1402 = vpop.permute.xlu0 %1401
  %1403 = vrot.lane.b32.xlu0 %v39, 90
  %v1404 = vpop.permute.xlu0 %1403
  %vm1405 = vcmask 736256
  %v1406 = vsel %vm1405, %v1392, %v1394
  %v1407 = vsel %vm1405, %v1394, %v1396
  %v1408 = vsel %vm1405, %v1396, %v1398
  %v1409 = vsel %vm1405, %v1398, %v1400
  %v1410 = vsel %vm1405, %v1400, %v1402
  %v1411 = vsel %vm1405, %v1402, %v1404
  %v1413 = vsel %vm61, %v1390, 0
  %v1416 = vsel %vm65, %v1406, 0
  %v1419 = vsel %vm65, %v1407, 0
  %v1422 = vsel %vm65, %v1408, 0
  %v1425 = vsel %vm65, %v1409, 0
  %v1428 = vsel %vm65, %v1410, 0
  %v1431 = vsel %vm65, %v1411, 0
  %1433 = vmatprep.subr.bf16.mxu0 %v1419
  %1434 = vmatpush1.bf16.msra.mxu0 %v1416
  %1435 = vmatprep.subr.bf16.mxu0 0
  %1436 = vmatpush1.bf16.msra.mxu0 0
  %1437 = vmatprep.subr.bf16.mxu0 0
  %1438 = vmatpush1.bf16.msra.mxu0 0
  %1439 = vmatprep.subr.bf16.mxu0 0
  %1440 = vmatpush1.bf16.msra.mxu0 0
  %1441 = vmatprep.subr.bf16.mxu0 0
  %1442 = vmatpush1.bf16.msra.mxu0 0
  %1443 = vmatprep.subr.bf16.mxu0 0
  %1444 = vmatpush1.bf16.msra.mxu0 0
  %1445 = vmatprep.subr.bf16.mxu0 0
  %1446 = vmatpush1.bf16.msra.mxu0 0
  %1447 = vmatprep.subr.bf16.mxu0 0
  %1448 = vmatpush1.bf16.msra.mxu0 0
  %1449 = vmatprep.subr.bf16.mxu0 0
  %1450 = vmatpush1.bf16.msra.mxu0 0
  %1451 = vmatprep.subr.bf16.mxu0 0
  %1452 = vmatpush1.bf16.msra.mxu0 0
  %1453 = vmatprep.subr.bf16.mxu0 0
  %1454 = vmatpush1.bf16.msra.mxu0 0
  %1455 = vmatprep.subr.bf16.mxu0 0
  %1456 = vmatpush1.bf16.msra.mxu0 0
  %1457 = vmatprep.subr.bf16.mxu0 0
  %1458 = vmatpush1.bf16.msra.mxu0 0
  %1459 = vmatprep.subr.bf16.mxu0 0
  %1460 = vmatpush1.bf16.msra.mxu0 0
  %1461 = vmatprep.subr.bf16.mxu0 0
  %1462 = vmatpush1.bf16.msra.mxu0 0
  %1463 = vmatprep.subr.bf16.mxu0 0
  %1464 = vmatpush1.bf16.msra.mxu0 0
  %1465 = vmatprep.mubr.bf16.mxu0 0
  %1466 = vmatmul.mubr.bf16.gmra.mrb[0].mxu0 %v1413
  %v1467 = vpop.f32.mrb[0].mxu0
  %v1468 = vadd.f32 0.0, %v1467
  %v1469 = vpop.f32.mrb[0].mxu0
  %v1470 = vadd.f32 0.0, %v1469
  %v1471 = vpop.f32.mrb[0].mxu0
  %v1472 = vpop.f32.mrb[0].mxu0
  %1473 = vdwg.mxu0
  %1474 = vmatprep.subr.bf16.mxu0 %v1425
  %1475 = vmatpush1.bf16.msra.mxu0 %v1422
  %1476 = vmatprep.subr.bf16.mxu0 0
  %1477 = vmatpush1.bf16.msra.mxu0 0
  %1478 = vmatprep.subr.bf16.mxu0 0
  %1479 = vmatpush1.bf16.msra.mxu0 0
  %1480 = vmatprep.subr.bf16.mxu0 0
  %1481 = vmatpush1.bf16.msra.mxu0 0
  %1482 = vmatprep.subr.bf16.mxu0 0
  %1483 = vmatpush1.bf16.msra.mxu0 0
  %1484 = vmatprep.subr.bf16.mxu0 0
  %1485 = vmatpush1.bf16.msra.mxu0 0
  %1486 = vmatprep.subr.bf16.mxu0 0
  %1487 = vmatpush1.bf16.msra.mxu0 0
  %1488 = vmatprep.subr.bf16.mxu0 0
  %1489 = vmatpush1.bf16.msra.mxu0 0
  %1490 = vmatprep.subr.bf16.mxu0 0
  %1491 = vmatpush1.bf16.msra.mxu0 0
  %1492 = vmatprep.subr.bf16.mxu0 0
  %1493 = vmatpush1.bf16.msra.mxu0 0
  %1494 = vmatprep.subr.bf16.mxu0 0
  %1495 = vmatpush1.bf16.msra.mxu0 0
  %1496 = vmatprep.subr.bf16.mxu0 0
  %1497 = vmatpush1.bf16.msra.mxu0 0
  %1498 = vmatprep.subr.bf16.mxu0 0
  %1499 = vmatpush1.bf16.msra.mxu0 0
  %1500 = vmatprep.subr.bf16.mxu0 0
  %1501 = vmatpush1.bf16.msra.mxu0 0
  %1502 = vmatprep.subr.bf16.mxu0 0
  %1503 = vmatpush1.bf16.msra.mxu0 0
  %1504 = vmatprep.subr.bf16.mxu0 0
  %1505 = vmatpush1.bf16.msra.mxu0 0
  %1506 = vmatprep.mubr.bf16.mxu0 0
  %1507 = vmatmul.mubr.bf16.gmra.mrb[0].mxu0 %v1413
  %v1508 = vpop.f32.mrb[0].mxu0
  %v1509 = vadd.f32 0.0, %v1508
  %v1510 = vpop.f32.mrb[0].mxu0
  %v1511 = vadd.f32 0.0, %v1510
  %v1512 = vpop.f32.mrb[0].mxu0
  %v1513 = vpop.f32.mrb[0].mxu0
  %1514 = vdwg.mxu0
  %1515 = vmatprep.subr.bf16.mxu0 %v1431
  %1516 = vmatpush1.bf16.msra.mxu0 %v1428
  %1517 = vmatprep.subr.bf16.mxu0 0
  %1518 = vmatpush1.bf16.msra.mxu0 0
  %1519 = vmatprep.subr.bf16.mxu0 0
  %1520 = vmatpush1.bf16.msra.mxu0 0
  %1521 = vmatprep.subr.bf16.mxu0 0
  %1522 = vmatpush1.bf16.msra.mxu0 0
  %1523 = vmatprep.subr.bf16.mxu0 0
  %1524 = vmatpush1.bf16.msra.mxu0 0
  %1525 = vmatprep.subr.bf16.mxu0 0
  %1526 = vmatpush1.bf16.msra.mxu0 0
  %1527 = vmatprep.subr.bf16.mxu0 0
  %1528 = vmatpush1.bf16.msra.mxu0 0
  %1529 = vmatprep.subr.bf16.mxu0 0
  %1530 = vmatpush1.bf16.msra.mxu0 0
  %1531 = vmatprep.subr.bf16.mxu0 0
  %1532 = vmatpush1.bf16.msra.mxu0 0
  %1533 = vmatprep.subr.bf16.mxu0 0
  %1534 = vmatpush1.bf16.msra.mxu0 0
  %1535 = vmatprep.subr.bf16.mxu0 0
  %1536 = vmatpush1.bf16.msra.mxu0 0
  %1537 = vmatprep.subr.bf16.mxu0 0
  %1538 = vmatpush1.bf16.msra.mxu0 0
  %1539 = vmatprep.subr.bf16.mxu0 0
  %1540 = vmatpush1.bf16.msra.mxu0 0
  %1541 = vmatprep.subr.bf16.mxu0 0
  %1542 = vmatpush1.bf16.msra.mxu0 0
  %1543 = vmatprep.subr.bf16.mxu0 0
  %1544 = vmatpush1.bf16.msra.mxu0 0
  %1545 = vmatprep.subr.bf16.mxu0 0
  %1546 = vmatpush1.bf16.msra.mxu0 0
  %1547 = vmatprep.mubr.bf16.mxu0 0
  %1548 = vmatmul.mubr.bf16.gmra.mrb[0].mxu0 %v1413
  %v1549 = vpop.f32.mrb[0].mxu0
  %v1550 = vadd.f32 0.0, %v1549
  %v1551 = vpop.f32.mrb[0].mxu0
  %v1552 = vadd.f32 0.0, %v1551
  %v1553 = vpop.f32.mrb[0].mxu0
  %v1554 = vpop.f32.mrb[0].mxu0
  %1555 = vdwg.mxu0
  %v1556 = vadd.f32 %v1383, %v1468
  %v1557 = vadd.f32 %v1384, %v1470
  %v1558 = vadd.f32 %v1385, %v1509
  %v1559 = vadd.f32 %v1386, %v1511
  %v1560 = vadd.f32 %v1387, %v1550
  %v1561 = vadd.f32 %v1388, %v1552
  %v1562 = vld [vmem:[%s2] sm:$0xff]
  %1564 = vset.pattern.permute.xlu0 0
  %1565 = vperm.xlu0 %1564, %v1562
  %v1566 = vpop.permute.xlu0 %1565
  %v1568 = vadd.f32 %v1556, %v1566
  %v1569 = vadd.f32 %v1557, %v1566
  %v1570 = vadd.f32 %v1558, %v1566
  %v1571 = vadd.f32 %v1559, %v1566
  %v1572 = vadd.f32 %v1560, %v1566
  %v1573 = vadd.f32 %v1561, %v1566
  %v1574 = vmax.f32 %v1568, 0.0
  %v1575 = vmax.f32 %v1569, 0.0
  %v1576 = vmax.f32 %v1570, 0.0
  %v1577 = vmax.f32 %v1571, 0.0
  %v1578 = vmax.f32 %v1572, 0.0
  %v1579 = vmax.f32 %v1573, 0.0
  %1580 = vst [vmem:[%s3] sm:$0xff] %v1574
  %1581 = vst [vmem:[%s3 + $0x8] sm:$0xff] %v1575
  %1582 = vst [vmem:[%s3 + $0x10] sm:$0xff] %v1576
  %1583 = vst [vmem:[%s3 + $0x18] sm:$0xff] %v1577
  %1584 = vst [vmem:[%s3 + $0x20] sm:$0xff] %v1578
  %1585 = vst [vmem:[%s3 + $0x28] sm:$0xff] %v1579
  // Predicated region
  $region14: #{conv_bn_relu.1} parent=0 // pred_check
    _
  $region15: #{conv_bn_relu.1} parent=0 // pred_check_branch
    %1587 = sbr.rel (0) target = $region17
  $region16: #{conv_bn_relu.1} parent=0 // pred_region
    _
  $region17: #{conv_bn_relu.1} parent=0 // pred_fallthru
    _
  // Predicated region
  $region18: #{conv_bn_relu.1} parent=0 // pred_check
    _
  $region19: #{conv_bn_relu.1} parent=0 // pred_check_branch
    %1589 = sbr.rel (0) target = $region21
  $region20: #{conv_bn_relu.1} parent=0 // pred_region
    _
  $region21: #{conv_bn_relu.1} parent=0 // pred_fallthru
    _

</llo_original>
